<compile_context>
chip_gen: v7x
topology: tpu7x:2x2x1
jax: 0.10.0
libtpu: 0.0.40
codegen_flags: <defaults>
</compile_context>

<pallas_src>
import functools

import jax
import jax.numpy as jnp
from jax.experimental import pallas as pl
from jax.experimental.pallas import tpu as pltpu


def _t5_lora_attn_kernel(x_ref, wqkv_ref, wo_ref, aq_ref, av_ref, bq_ref, bv_ref,
                         o_ref, *, n_heads):
    H = n_heads
    x = x_ref[0]                                   # (S, D) f32
    S, D = x.shape
    xb = x.astype(jnp.bfloat16)                    # bf16 operands for the MXU

    # ---- fused Q|K|V projection: one batched matmul over 3H per-head groups ----
    xg = jnp.broadcast_to(xb[None], (3 * H, S, D))                      # (3H, S, D)
    qkv = jnp.einsum('gsk,gkd->gsd', xg, wqkv_ref[...],
                     preferred_element_type=jnp.float32)                # (3H, S, d) f32
    q, k, v = qkv[:H], qkv[H:2 * H], qkv[2 * H:]                        # leading-dim slices

    # ---- LoRA low-rank updates on q and v (scaling already folded into B) ----
    xa_q = jnp.dot(xb, aq_ref[...],
                   preferred_element_type=jnp.float32).astype(jnp.bfloat16)   # (S, r)
    xa_v = jnp.dot(xb, av_ref[...],
                   preferred_element_type=jnp.float32).astype(jnp.bfloat16)   # (S, r)
    q = q + jnp.einsum('hsr,hrd->hsd',
                       jnp.broadcast_to(xa_q[None], (H,) + xa_q.shape),
                       bq_ref[...], preferred_element_type=jnp.float32)
    v = v + jnp.einsum('hsr,hrd->hsd',
                       jnp.broadcast_to(xa_v[None], (H,) + xa_v.shape),
                       bv_ref[...], preferred_element_type=jnp.float32)

    # ---- T5 attention: no 1/sqrt(d) scale, zero position bias, eval (no dropout) ----
    s = jnp.einsum('hqd,hkd->hqk', q.astype(jnp.bfloat16), k.astype(jnp.bfloat16),
                   preferred_element_type=jnp.float32)                  # (H, S, S) f32
    s = s - jnp.max(s, axis=-1, keepdims=True)
    p = jnp.exp(s)
    p = p * pl.reciprocal(jnp.sum(p, axis=-1, keepdims=True), approx=True)

    ctx = jnp.einsum('hqk,hkd->hqd', p.astype(jnp.bfloat16), v.astype(jnp.bfloat16),
                     preferred_element_type=jnp.float32)                # (H, S, d)

    # ---- per-head output projection, accumulated over heads (no lane concat) ----
    out_h = jnp.einsum('hsd,hdk->hsk', ctx.astype(jnp.bfloat16), wo_ref[...],
                       preferred_element_type=jnp.float32)              # (H, S, D)
    o_ref[0] = jnp.sum(out_h, axis=0)                                   # (S, D)


def t5_attention_lora_forward(x, w_qkv_h, wo_h, aq_t, av_t, bq_h, bv_h,
                              *, n_heads, d_kv):
    """x: (B, S, D) f32.  Weights pre-packed per head (see _prep_weights)."""
    B, S, D = x.shape
    H = n_heads
    r = aq_t.shape[1]
    kern = functools.partial(_t5_lora_attn_kernel, n_heads=H)

    attn_out = pl.pallas_call(
        kern,
        out_shape=jax.ShapeDtypeStruct((B, S, D), jnp.float32),
        grid=(B,),
        in_specs=[
            pl.BlockSpec((1, S, D), lambda b: (b, 0, 0)),          # hidden_states
            pl.BlockSpec((3 * H, D, d_kv), lambda b: (0, 0, 0)),   # fused Wq|Wk|Wv per head
            pl.BlockSpec((H, d_kv, D), lambda b: (0, 0, 0)),       # Wo per head
            pl.BlockSpec((D, r), lambda b: (0, 0)),                # LoRA A (q)
            pl.BlockSpec((D, r), lambda b: (0, 0)),                # LoRA A (v)
            pl.BlockSpec((H, r, d_kv), lambda b: (0, 0, 0)),       # LoRA B (q), scaled
            pl.BlockSpec((H, r, d_kv), lambda b: (0, 0, 0)),       # LoRA B (v), scaled
        ],
        out_specs=pl.BlockSpec((1, S, D), lambda b: (b, 0, 0)),
        compiler_params=pltpu.CompilerParams(
            dimension_semantics=("parallel",),        # batch axis -> megacore / 2-TC v7x
            vmem_limit_bytes=32 * 1024 * 1024,
        ),
    )(x, w_qkv_h, wo_h, aq_t, av_t, bq_h, bv_h)

    # position_bias returned by the module: zeros (no relative bias, no mask)
    position_bias = jnp.zeros((1, n_heads, S, S), dtype=attn_out.dtype)
    # present_key_value_state is None (not decoder / use_cache=False)
    return attn_out, None, position_bias


def _prep_weights(wq, wk, wv, wo, lora_a_q, lora_b_q, lora_a_v, lora_b_v,
                  *, n_heads, d_kv, lora_alpha=1.0):
    """Torch-layout weights -> per-head, bf16, MXU-friendly tensors."""
    H, d = n_heads, d_kv
    inner, D = wq.shape
    r = lora_a_q.shape[0]
    scaling = lora_alpha / r

    def per_head_in_out(w):            # (inner, D) -> (H, D, d): w_h[h] = W[h*d:(h+1)*d, :]^T
        return jnp.transpose(w.reshape(H, d, D), (0, 2, 1))

    w_qkv_h = jnp.concatenate([per_head_in_out(wq),
                               per_head_in_out(wk),
                               per_head_in_out(wv)], axis=0)            # (3H, D, d)
    wo_h = wo.T.reshape(H, d, D)                                        # (H, d, D)
    aq_t = lora_a_q.T                                                   # (D, r)
    av_t = lora_a_v.T

    def per_head_b(b):                 # (inner, r) -> (H, r, d), with scaling folded in
        return jnp.transpose((b * scaling).reshape(H, d, r), (0, 2, 1))

    bq_h = per_head_b(lora_b_q)
    bv_h = per_head_b(lora_b_v)
    bf = jnp.bfloat16
    return (w_qkv_h.astype(bf), wo_h.astype(bf), aq_t.astype(bf), av_t.astype(bf),
            bq_h.astype(bf), bv_h.astype(bf))


def _reference_forward(x, wq, wk, wv, wo, lora_a_q, lora_b_q, lora_a_v, lora_b_v,
                       *, scaling, n_heads, d_kv):
    """Pure-JAX f32 reference of the module's eval forward."""
    B, S, D = x.shape
    inner = n_heads * d_kv
    q = x @ wq.T + (x @ lora_a_q.T) @ lora_b_q.T * scaling
    k = x @ wk.T
    v = x @ wv.T + (x @ lora_a_v.T) @ lora_b_v.T * scaling

    def shp(t):
        return t.reshape(B, S, n_heads, d_kv).transpose(0, 2, 1, 3)

    qh, kh, vh = shp(q), shp(k), shp(v)
    s = jnp.einsum('bhqd,bhkd->bhqk', qh, kh)
    p = jax.nn.softmax(s, axis=-1)
    ctx = jnp.einsum('bhqk,bhkd->bhqd', p, vh)
    ctx = ctx.transpose(0, 2, 1, 3).reshape(B, S, inner)
    return ctx @ wo.T


if __name__ == "__main__":
    # Small T5 config: d_model=32, num_heads=4, d_kv=8 -> inner_dim=32; LoRA r=16
    B, S, D = 2, 8, 32
    n_heads, d_kv = 4, 8
    inner = n_heads * d_kv
    r, lora_alpha = 16, 1.0

    key = jax.random.PRNGKey(0)
    kx, kq, kk, kv, ko, kaq, kbq, kav, kbv = jax.random.split(key, 9)

    x = jax.random.normal(kx, (B, S, D), dtype=jnp.float32)

    # nn.Linear / lora.Linear weights in torch layout (out_features, in_features)
    wq = 0.02 * jax.random.normal(kq, (inner, D), dtype=jnp.float32)
    wk = 0.02 * jax.random.normal(kk, (inner, D), dtype=jnp.float32)
    wv = 0.02 * jax.random.normal(kv, (inner, D), dtype=jnp.float32)
    wo = 0.02 * jax.random.normal(ko, (D, inner), dtype=jnp.float32)
    # LoRA params: A (r, in), B (out, r).  Real init has B == 0; use nonzero values
    # here so the low-rank path is actually exercised by the check.
    lora_a_q = 0.05 * jax.random.normal(kaq, (r, D), dtype=jnp.float32)
    lora_b_q = 0.05 * jax.random.normal(kbq, (inner, r), dtype=jnp.float32)
    lora_a_v = 0.05 * jax.random.normal(kav, (r, D), dtype=jnp.float32)
    lora_b_v = 0.05 * jax.random.normal(kbv, (inner, r), dtype=jnp.float32)

    packed = _prep_weights(wq, wk, wv, wo, lora_a_q, lora_b_q, lora_a_v, lora_b_v,
                           n_heads=n_heads, d_kv=d_kv, lora_alpha=lora_alpha)

    attn_out, present, pos_bias = t5_attention_lora_forward(
        x, *packed, n_heads=n_heads, d_kv=d_kv)
    attn_out = jax.block_until_ready(attn_out)

    ref = _reference_forward(x, wq, wk, wv, wo, lora_a_q, lora_b_q, lora_a_v, lora_b_v,
                             scaling=lora_alpha / r, n_heads=n_heads, d_kv=d_kv)

    assert attn_out.shape == (B, S, D)
    assert present is None
    assert pos_bias.shape == (1, n_heads, S, S)
    # bf16 MXU operands + EUP approx reciprocal -> relaxed tolerance vs the f32 reference
    assert jnp.allclose(attn_out, ref, atol=5e-3, rtol=5e-2), "mismatch vs reference"

    print("KERNEL_OK")
</pallas_src>

<mosaic_0001>
module attributes {stable_mosaic.version = 11 : i64} {
  func.func @_t5_lora_attn_kernel(%arg0: i32, %arg1: memref<1x8x32xf32, #tpu.memory_space<vmem>>, %arg2: memref<12x32x8xbf16, #tpu.memory_space<vmem>>, %arg3: memref<4x8x32xbf16, #tpu.memory_space<vmem>>, %arg4: memref<32x16xbf16, #tpu.memory_space<vmem>>, %arg5: memref<32x16xbf16, #tpu.memory_space<vmem>>, %arg6: memref<4x16x8xbf16, #tpu.memory_space<vmem>>, %arg7: memref<4x16x8xbf16, #tpu.memory_space<vmem>>, %arg8: memref<1x8x32xf32, #tpu.memory_space<vmem>>) attributes {dimension_semantics = [#tpu.dimension_semantics<parallel>], iteration_bounds = array<i64: 2>, scalar_prefetch = 0 : i64, scratch_operands = 0 : i64, tpu.core_type = #tpu.core_type<tc>, window_params = [{transform_indices = @transform_0, window_bounds = array<i64: 1, 8, 32>}, {pipeline_mode = #tpu.pipeline_mode<synchronous>, transform_indices = @transform_1, window_bounds = array<i64: 12, 32, 8>}, {pipeline_mode = #tpu.pipeline_mode<synchronous>, transform_indices = @transform_2, window_bounds = array<i64: 4, 8, 32>}, {pipeline_mode = #tpu.pipeline_mode<synchronous>, transform_indices = @transform_3, window_bounds = array<i64: 32, 16>}, {pipeline_mode = #tpu.pipeline_mode<synchronous>, transform_indices = @transform_4, window_bounds = array<i64: 32, 16>}, {pipeline_mode = #tpu.pipeline_mode<synchronous>, transform_indices = @transform_5, window_bounds = array<i64: 4, 16, 8>}, {pipeline_mode = #tpu.pipeline_mode<synchronous>, transform_indices = @transform_6, window_bounds = array<i64: 4, 16, 8>}, {transform_indices = @transform_7, window_bounds = array<i64: 1, 8, 32>}]} {
    %c0 = arith.constant 0 : index
    %c0_0 = arith.constant 0 : index
    %c0_1 = arith.constant 0 : index
    %0 = vector.load %arg1[%c0, %c0_0, %c0_1] : memref<1x8x32xf32, #tpu.memory_space<vmem>>, vector<1x8x32xf32>
    %1 = vector.shape_cast %0 : vector<1x8x32xf32> to vector<8x32xf32>
    %2 = arith.truncf %1 : vector<8x32xf32> to vector<8x32xbf16>
    %3 = vector.shape_cast %2 : vector<8x32xbf16> to vector<1x8x32xbf16>
    %4 = vector.shape_cast %3 : vector<1x8x32xbf16> to vector<1x8x32xbf16>
    %5 = vector.broadcast %4 : vector<1x8x32xbf16> to vector<12x8x32xbf16>
    %c0_2 = arith.constant 0 : index
    %c0_3 = arith.constant 0 : index
    %c0_4 = arith.constant 0 : index
    %6 = vector.load %arg2[%c0_2, %c0_3, %c0_4] : memref<12x32x8xbf16, #tpu.memory_space<vmem>>, vector<12x32x8xbf16>
    "tpu.trace_start"() <{level = 10 : i32, message = "gsk,gkd->gsd"}> : () -> ()
    %cst = arith.constant dense<0.000000e+00> : vector<12x8x8xf32>
    %7 = tpu.matmul %5, %6, %cst {dimension_numbers = #tpu.dot_dimension_numbers<[2], [1], [1], [2], [0, 0, 0, 1, 1, 2], [0], [0]>} : vector<12x8x32xbf16>, vector<12x32x8xbf16>, vector<12x8x8xf32> -> vector<12x8x8xf32>
    "tpu.trace_stop"() : () -> ()
    %8 = vector.extract_strided_slice %7 {offsets = [0, 0, 0], sizes = [4, 8, 8], strides = [1, 1, 1]} : vector<12x8x8xf32> to vector<4x8x8xf32>
    %9 = vector.extract_strided_slice %7 {offsets = [4, 0, 0], sizes = [4, 8, 8], strides = [1, 1, 1]} : vector<12x8x8xf32> to vector<4x8x8xf32>
    %10 = vector.extract_strided_slice %7 {offsets = [8, 0, 0], sizes = [4, 8, 8], strides = [1, 1, 1]} : vector<12x8x8xf32> to vector<4x8x8xf32>
    %c0_5 = arith.constant 0 : index
    %c0_6 = arith.constant 0 : index
    %11 = vector.load %arg4[%c0_5, %c0_6] : memref<32x16xbf16, #tpu.memory_space<vmem>>, vector<32x16xbf16>
    %cst_7 = arith.constant dense<0.000000e+00> : vector<8x16xf32>
    %12 = tpu.matmul %2, %11, %cst_7 {dimension_numbers = #tpu.dot_dimension_numbers<[1], [0], [0], [1], [0, 0, 1, 1], [], []>} : vector<8x32xbf16>, vector<32x16xbf16>, vector<8x16xf32> -> vector<8x16xf32>
    %13 = arith.truncf %12 : vector<8x16xf32> to vector<8x16xbf16>
    %c0_8 = arith.constant 0 : index
    %c0_9 = arith.constant 0 : index
    %14 = vector.load %arg5[%c0_8, %c0_9] : memref<32x16xbf16, #tpu.memory_space<vmem>>, vector<32x16xbf16>
    %cst_10 = arith.constant dense<0.000000e+00> : vector<8x16xf32>
    %15 = tpu.matmul %2, %14, %cst_10 {dimension_numbers = #tpu.dot_dimension_numbers<[1], [0], [0], [1], [0, 0, 1, 1], [], []>} : vector<8x32xbf16>, vector<32x16xbf16>, vector<8x16xf32> -> vector<8x16xf32>
    %16 = arith.truncf %15 : vector<8x16xf32> to vector<8x16xbf16>
    %17 = vector.shape_cast %13 : vector<8x16xbf16> to vector<1x8x16xbf16>
    %18 = vector.shape_cast %17 : vector<1x8x16xbf16> to vector<1x8x16xbf16>
    %19 = vector.broadcast %18 : vector<1x8x16xbf16> to vector<4x8x16xbf16>
    %c0_11 = arith.constant 0 : index
    %c0_12 = arith.constant 0 : index
    %c0_13 = arith.constant 0 : index
    %20 = vector.load %arg6[%c0_11, %c0_12, %c0_13] : memref<4x16x8xbf16, #tpu.memory_space<vmem>>, vector<4x16x8xbf16>
    "tpu.trace_start"() <{level = 10 : i32, message = "hsr,hrd->hsd"}> : () -> ()
    %cst_14 = arith.constant dense<0.000000e+00> : vector<4x8x8xf32>
    %21 = tpu.matmul %19, %20, %cst_14 {dimension_numbers = #tpu.dot_dimension_numbers<[2], [1], [1], [2], [0, 0, 0, 1, 1, 2], [0], [0]>} : vector<4x8x16xbf16>, vector<4x16x8xbf16>, vector<4x8x8xf32> -> vector<4x8x8xf32>
    "tpu.trace_stop"() : () -> ()
    %22 = arith.addf %8, %21 : vector<4x8x8xf32>
    %23 = vector.shape_cast %16 : vector<8x16xbf16> to vector<1x8x16xbf16>
    %24 = vector.shape_cast %23 : vector<1x8x16xbf16> to vector<1x8x16xbf16>
    %25 = vector.broadcast %24 : vector<1x8x16xbf16> to vector<4x8x16xbf16>
    %c0_15 = arith.constant 0 : index
    %c0_16 = arith.constant 0 : index
    %c0_17 = arith.constant 0 : index
    %26 = vector.load %arg7[%c0_15, %c0_16, %c0_17] : memref<4x16x8xbf16, #tpu.memory_space<vmem>>, vector<4x16x8xbf16>
    "tpu.trace_start"() <{level = 10 : i32, message = "hsr,hrd->hsd"}> : () -> ()
    %cst_18 = arith.constant dense<0.000000e+00> : vector<4x8x8xf32>
    %27 = tpu.matmul %25, %26, %cst_18 {dimension_numbers = #tpu.dot_dimension_numbers<[2], [1], [1], [2], [0, 0, 0, 1, 1, 2], [0], [0]>} : vector<4x8x16xbf16>, vector<4x16x8xbf16>, vector<4x8x8xf32> -> vector<4x8x8xf32>
    "tpu.trace_stop"() : () -> ()
    %28 = arith.addf %10, %27 : vector<4x8x8xf32>
    %29 = arith.truncf %22 : vector<4x8x8xf32> to vector<4x8x8xbf16>
    %30 = arith.truncf %9 : vector<4x8x8xf32> to vector<4x8x8xbf16>
    "tpu.trace_start"() <{level = 10 : i32, message = "hqd,hkd->hqk"}> : () -> ()
    %cst_19 = arith.constant dense<0.000000e+00> : vector<4x8x8xf32>
    %31 = tpu.matmul %29, %30, %cst_19 {dimension_numbers = #tpu.dot_dimension_numbers<[2], [2], [1], [1], [0, 0, 0, 1, 1, 1], [0], [0]>} : vector<4x8x8xbf16>, vector<4x8x8xbf16>, vector<4x8x8xf32> -> vector<4x8x8xf32>
    "tpu.trace_stop"() : () -> ()
    %cst_20 = arith.constant dense<0xFF800000> : vector<4x8xf32>
    %32 = vector.multi_reduction <maximumf>, %31, %cst_20 [2] : vector<4x8x8xf32> to vector<4x8xf32>
    %33 = vector.shape_cast %32 : vector<4x8xf32> to vector<4x8x1xf32>
    %34 = vector.broadcast %33 : vector<4x8x1xf32> to vector<4x8x8xf32>
    %35 = arith.subf %31, %34 : vector<4x8x8xf32>
    %36 = math.exp %35 : vector<4x8x8xf32>
    %cst_21 = arith.constant dense<0.000000e+00> : vector<4x8xf32>
    %37 = vector.multi_reduction <add>, %36, %cst_21 [2] : vector<4x8x8xf32> to vector<4x8xf32>
    %38 = vector.shape_cast %37 : vector<4x8xf32> to vector<4x8x1xf32>
    %39 = tpu.reciprocal %38 {approx = true} : vector<4x8x1xf32> -> vector<4x8x1xf32>
    %40 = vector.broadcast %39 : vector<4x8x1xf32> to vector<4x8x8xf32>
    %41 = arith.mulf %36, %40 : vector<4x8x8xf32>
    %42 = arith.truncf %41 : vector<4x8x8xf32> to vector<4x8x8xbf16>
    %43 = arith.truncf %28 : vector<4x8x8xf32> to vector<4x8x8xbf16>
    "tpu.trace_start"() <{level = 10 : i32, message = "hqk,hkd->hqd"}> : () -> ()
    %cst_22 = arith.constant dense<0.000000e+00> : vector<4x8x8xf32>
    %44 = tpu.matmul %42, %43, %cst_22 {dimension_numbers = #tpu.dot_dimension_numbers<[2], [1], [1], [2], [0, 0, 0, 1, 1, 2], [0], [0]>} : vector<4x8x8xbf16>, vector<4x8x8xbf16>, vector<4x8x8xf32> -> vector<4x8x8xf32>
    "tpu.trace_stop"() : () -> ()
    %45 = arith.truncf %44 : vector<4x8x8xf32> to vector<4x8x8xbf16>
    %c0_23 = arith.constant 0 : index
    %c0_24 = arith.constant 0 : index
    %c0_25 = arith.constant 0 : index
    %46 = vector.load %arg3[%c0_23, %c0_24, %c0_25] : memref<4x8x32xbf16, #tpu.memory_space<vmem>>, vector<4x8x32xbf16>
    "tpu.trace_start"() <{level = 10 : i32, message = "hsd,hdk->hsk"}> : () -> ()
    %cst_26 = arith.constant dense<0.000000e+00> : vector<4x8x32xf32>
    %47 = tpu.matmul %45, %46, %cst_26 {dimension_numbers = #tpu.dot_dimension_numbers<[2], [1], [1], [2], [0, 0, 0, 1, 1, 2], [0], [0]>} : vector<4x8x8xbf16>, vector<4x8x32xbf16>, vector<4x8x32xf32> -> vector<4x8x32xf32>
    "tpu.trace_stop"() : () -> ()
    %cst_27 = arith.constant dense<0.000000e+00> : vector<8x32xf32>
    %48 = vector.multi_reduction <add>, %47, %cst_27 [0] : vector<4x8x32xf32> to vector<8x32xf32>
    %c0_28 = arith.constant 0 : index
    %c0_29 = arith.constant 0 : index
    %c0_30 = arith.constant 0 : index
    %49 = vector.load %arg8[%c0_28, %c0_29, %c0_30] : memref<1x8x32xf32, #tpu.memory_space<vmem>>, vector<1x8x32xf32>
    %50 = vector.shape_cast %49 : vector<1x8x32xf32> to vector<8x32xf32>
    %51 = vector.shape_cast %48 : vector<8x32xf32> to vector<1x8x32xf32>
    tpu.vector_store %arg8[%c0_28, %c0_29, %c0_30], %51 {strides = array<i32>} : memref<1x8x32xf32, #tpu.memory_space<vmem>>, vector<1x8x32xf32>,
    return
  }
  func.func @transform_0(%arg0: i32) -> (i32, i32, i32) {
    %c0_i32 = arith.constant 0 : i32
    %c0_i32_0 = arith.constant 0 : i32
    %c0_i32_1 = arith.constant 0 : i32
    return %arg0, %c0_i32, %c0_i32_0 : i32, i32, i32
  }
  func.func @transform_1(%arg0: i32) -> (i32, i32, i32) {
    %c0_i32 = arith.constant 0 : i32
    %c0_i32_0 = arith.constant 0 : i32
    %c0_i32_1 = arith.constant 0 : i32
    %c0_i32_2 = arith.constant 0 : i32
    return %c0_i32, %c0_i32_0, %c0_i32_1 : i32, i32, i32
  }
  func.func @transform_2(%arg0: i32) -> (i32, i32, i32) {
    %c0_i32 = arith.constant 0 : i32
    %c0_i32_0 = arith.constant 0 : i32
    %c0_i32_1 = arith.constant 0 : i32
    %c0_i32_2 = arith.constant 0 : i32
    return %c0_i32, %c0_i32_0, %c0_i32_1 : i32, i32, i32
  }
  func.func @transform_3(%arg0: i32) -> (i32, i32) {
    %c0_i32 = arith.constant 0 : i32
    %c0_i32_0 = arith.constant 0 : i32
    %c0_i32_1 = arith.constant 0 : i32
    return %c0_i32, %c0_i32_0 : i32, i32
  }
  func.func @transform_4(%arg0: i32) -> (i32, i32) {
    %c0_i32 = arith.constant 0 : i32
    %c0_i32_0 = arith.constant 0 : i32
    %c0_i32_1 = arith.constant 0 : i32
    return %c0_i32, %c0_i32_0 : i32, i32
  }
  func.func @transform_5(%arg0: i32) -> (i32, i32, i32) {
    %c0_i32 = arith.constant 0 : i32
    %c0_i32_0 = arith.constant 0 : i32
    %c0_i32_1 = arith.constant 0 : i32
    %c0_i32_2 = arith.constant 0 : i32
    return %c0_i32, %c0_i32_0, %c0_i32_1 : i32, i32, i32
  }
  func.func @transform_6(%arg0: i32) -> (i32, i32, i32) {
    %c0_i32 = arith.constant 0 : i32
    %c0_i32_0 = arith.constant 0 : i32
    %c0_i32_1 = arith.constant 0 : i32
    %c0_i32_2 = arith.constant 0 : i32
    return %c0_i32, %c0_i32_0, %c0_i32_1 : i32, i32, i32
  }
  func.func @transform_7(%arg0: i32) -> (i32, i32, i32) {
    %c0_i32 = arith.constant 0 : i32
    %c0_i32_0 = arith.constant 0 : i32
    %c0_i32_1 = arith.constant 0 : i32
    return %arg0, %c0_i32, %c0_i32_0 : i32, i32, i32
  }
}

</mosaic_0001>

<llo_original>
// kernel: tpu_custom_call.1
$region0: #{tpu_custom_call.1}
  #allocation0 [shape = 'u32[]', space=smem, size = 0x4, offset = 0x4, fixed_abs, tag = 'smem constant byte address 0x4 - core index']
  #allocation1 [shape = 'u32[144,128]{1,0:T(1,128)}', space=vmem, size = 0x12000, scoped, tag = 'internal scratch']
  %s0 = inlined_call_operand.vmem [shape: f32[2,8,32], index: 0, kind: input, shape index: {}]
  %s1 = inlined_call_operand.vmem [shape: bf16[12,32,8], index: 1, kind: input, shape index: {}]
  %s2 = inlined_call_operand.vmem [shape: bf16[4,8,32], index: 2, kind: input, shape index: {}]
  %s3 = inlined_call_operand.vmem [shape: bf16[32,16], index: 3, kind: input, shape index: {}]
  %s4 = inlined_call_operand.vmem [shape: bf16[32,16], index: 4, kind: input, shape index: {}]
  %s5 = inlined_call_operand.vmem [shape: bf16[4,16,8], index: 5, kind: input, shape index: {}]
  %s6 = inlined_call_operand.vmem [shape: bf16[4,16,8], index: 6, kind: input, shape index: {}]
  %s7 = inlined_call_operand.hbm [shape: f32[2,8,32], index: 7, kind: output, shape index: {}]
  %s8 = sld [smem:[#allocation0]]
  $region61: #{tpu_custom_call.1} parent=0
    _
  %s10 = ssub.s32 1, %s8
  %s11 = scalar_select 0, %s10, %s8
  $region1: #{tpu_custom_call.1} parent=0
    #allocation2 [shape = 'u8[8192]{0}', space=vmem, size = 0x2000, scoped, tag = 'output window, operand 0']
    #allocation3 [shape = 's32[2]{0}', space=sflag, size = 0x8, scoped, tag = 'scoped memory for tpu_custom_call.1']
    %12 = vsyncpa [#allocation3], 0
    %s13 = scalar_lea.sflag [#allocation3], 1
    %14 = vsyncpa %s13, 0
    loop: start=0, step=1, limit=4
    $region2: #{tpu_custom_call.1} parent=1 // loop_pre_header
      _
    $region3: #{tpu_custom_call.1} parent=1 // loop_header
      %s16 = sphi 0, %s20
      %p17 = scmp.ge.s32.totalorder %s16, 4
      %s26 = sphi 0, %s28
      %s29 = sphi 0, %s26
      %s30 = sphi 0, %s29
      %s46 = sphi 0, %s30
      %s50 = sphi 0, %s50
      %s52 = sphi 0, %s50
      %s53 = sphi 0, %s52
      %s67 = sphi 0, %s53
      %s71 = sphi 0, %s71
      %s73 = sphi 0, %s71
      %s74 = sphi 0, %s73
      %s88 = sphi 0, %s74
      %s92 = sphi 0, %s92
      %s94 = sphi 0, %s92
      %s95 = sphi 0, %s94
      %s109 = sphi 0, %s95
      %s113 = sphi 0, %s113
      %s115 = sphi 0, %s113
      %s116 = sphi 0, %s115
      %s130 = sphi 0, %s116
      %s134 = sphi 0, %s134
      %s136 = sphi 0, %s134
      %s137 = sphi 0, %s136
      %s151 = sphi 0, %s137
      %s155 = sphi 0, %s155
      %s157 = sphi 0, %s155
      %s158 = sphi 0, %s157
      %s172 = sphi 0, %s158
      %s178 = sphi 0, %s180
      %s181 = sphi 0, %s178
      %s182 = sphi 0, %s181
      %s198 = sphi 0, %s182
    $region4: #{tpu_custom_call.1} parent=1 // loop_header_branch
      %19 = sbr.rel (%p17) target = $region8
    $region5: #{tpu_custom_call.1} parent=1 // loop_body
      %s21 = ssub.s32 %s16, 1
      %s22 = ssub.s32 %s16, 2
      %s23 = sadd.s32 %s16, 1
      %s24 = ssub.s32 %s16, %s23
      %p25 = scmp.eq.s32.totalorder %s24, 0
      %s27 = sadd.s32 %s26, 1
      %s28 = scalar_select %p25, %s26, %s27
      %p31 = pneg %p25
      %p32 = scmp.eq.s32.totalorder %s16, 1
      %p33 = por %p31, %p32
      %p34 = scmp.ne.s32.totalorder %s26, %s29
      %p35 = scmp.eq.s32.totalorder %s16, 0
      %p36 = por %p34, %p35
      %p37 = scmp.ne.s32.totalorder %s26, %s29
      %p38 = scmp.eq.s32.totalorder %s21, 1
      %p39 = por %p37, %p38
      %p40 = scmp.ne.s32.totalorder %s29, %s30
      %p41 = scmp.eq.s32.totalorder %s21, 0
      %p42 = por %p40, %p41
      %p43 = scmp.ne.s32.totalorder %s29, %s30
      %p44 = scmp.eq.s32.totalorder %s22, 1
      %p45 = por %p43, %p44
      %p47 = scmp.ne.s32.totalorder %s30, %s46
      %p48 = scmp.eq.s32.totalorder %s22, 0
      %p49 = por %p47, %p48
      %s51 = sadd.s32 %s50, 1
      %p54 = scmp.eq.s32.totalorder %s16, 1
      %p55 = scmp.ne.s32.totalorder %s50, %s52
      %p56 = scmp.eq.s32.totalorder %s16, 0
      %p57 = por %p55, %p56
      %p58 = scmp.ne.s32.totalorder %s50, %s52
      %p59 = scmp.eq.s32.totalorder %s21, 1
      %p60 = por %p58, %p59
      %p61 = scmp.ne.s32.totalorder %s52, %s53
      %p62 = scmp.eq.s32.totalorder %s21, 0
      %p63 = por %p61, %p62
      %p64 = scmp.ne.s32.totalorder %s52, %s53
      %p65 = scmp.eq.s32.totalorder %s22, 1
      %p66 = por %p64, %p65
      %p68 = scmp.ne.s32.totalorder %s53, %s67
      %p69 = scmp.eq.s32.totalorder %s22, 0
      %p70 = por %p68, %p69
      %s72 = sadd.s32 %s71, 1
      %p75 = scmp.eq.s32.totalorder %s16, 1
      %p76 = scmp.ne.s32.totalorder %s71, %s73
      %p77 = scmp.eq.s32.totalorder %s16, 0
      %p78 = por %p76, %p77
      %p79 = scmp.ne.s32.totalorder %s71, %s73
      %p80 = scmp.eq.s32.totalorder %s21, 1
      %p81 = por %p79, %p80
      %p82 = scmp.ne.s32.totalorder %s73, %s74
      %p83 = scmp.eq.s32.totalorder %s21, 0
      %p84 = por %p82, %p83
      %p85 = scmp.ne.s32.totalorder %s73, %s74
      %p86 = scmp.eq.s32.totalorder %s22, 1
      %p87 = por %p85, %p86
      %p89 = scmp.ne.s32.totalorder %s74, %s88
      %p90 = scmp.eq.s32.totalorder %s22, 0
      %p91 = por %p89, %p90
      %s93 = sadd.s32 %s92, 1
      %p96 = scmp.eq.s32.totalorder %s16, 1
      %p97 = scmp.ne.s32.totalorder %s92, %s94
      %p98 = scmp.eq.s32.totalorder %s16, 0
      %p99 = por %p97, %p98
      %p100 = scmp.ne.s32.totalorder %s92, %s94
      %p101 = scmp.eq.s32.totalorder %s21, 1
      %p102 = por %p100, %p101
      %p103 = scmp.ne.s32.totalorder %s94, %s95
      %p104 = scmp.eq.s32.totalorder %s21, 0
      %p105 = por %p103, %p104
      %p106 = scmp.ne.s32.totalorder %s94, %s95
      %p107 = scmp.eq.s32.totalorder %s22, 1
      %p108 = por %p106, %p107
      %p110 = scmp.ne.s32.totalorder %s95, %s109
      %p111 = scmp.eq.s32.totalorder %s22, 0
      %p112 = por %p110, %p111
      %s114 = sadd.s32 %s113, 1
      %p117 = scmp.eq.s32.totalorder %s16, 1
      %p118 = scmp.ne.s32.totalorder %s113, %s115
      %p119 = scmp.eq.s32.totalorder %s16, 0
      %p120 = por %p118, %p119
      %p121 = scmp.ne.s32.totalorder %s113, %s115
      %p122 = scmp.eq.s32.totalorder %s21, 1
      %p123 = por %p121, %p122
      %p124 = scmp.ne.s32.totalorder %s115, %s116
      %p125 = scmp.eq.s32.totalorder %s21, 0
      %p126 = por %p124, %p125
      %p127 = scmp.ne.s32.totalorder %s115, %s116
      %p128 = scmp.eq.s32.totalorder %s22, 1
      %p129 = por %p127, %p128
      %p131 = scmp.ne.s32.totalorder %s116, %s130
      %p132 = scmp.eq.s32.totalorder %s22, 0
      %p133 = por %p131, %p132
      %s135 = sadd.s32 %s134, 1
      %p138 = scmp.eq.s32.totalorder %s16, 1
      %p139 = scmp.ne.s32.totalorder %s134, %s136
      %p140 = scmp.eq.s32.totalorder %s16, 0
      %p141 = por %p139, %p140
      %p142 = scmp.ne.s32.totalorder %s134, %s136
      %p143 = scmp.eq.s32.totalorder %s21, 1
      %p144 = por %p142, %p143
      %p145 = scmp.ne.s32.totalorder %s136, %s137
      %p146 = scmp.eq.s32.totalorder %s21, 0
      %p147 = por %p145, %p146
      %p148 = scmp.ne.s32.totalorder %s136, %s137
      %p149 = scmp.eq.s32.totalorder %s22, 1
      %p150 = por %p148, %p149
      %p152 = scmp.ne.s32.totalorder %s137, %s151
      %p153 = scmp.eq.s32.totalorder %s22, 0
      %p154 = por %p152, %p153
      %s156 = sadd.s32 %s155, 1
      %p159 = scmp.eq.s32.totalorder %s16, 1
      %p160 = scmp.ne.s32.totalorder %s155, %s157
      %p161 = scmp.eq.s32.totalorder %s16, 0
      %p162 = por %p160, %p161
      %p163 = scmp.ne.s32.totalorder %s155, %s157
      %p164 = scmp.eq.s32.totalorder %s21, 1
      %p165 = por %p163, %p164
      %p166 = scmp.ne.s32.totalorder %s157, %s158
      %p167 = scmp.eq.s32.totalorder %s21, 0
      %p168 = por %p166, %p167
      %p169 = scmp.ne.s32.totalorder %s157, %s158
      %p170 = scmp.eq.s32.totalorder %s22, 1
      %p171 = por %p169, %p170
      %p173 = scmp.ne.s32.totalorder %s158, %s172
      %p174 = scmp.eq.s32.totalorder %s22, 0
      %p175 = por %p173, %p174
      %s176 = ssub.s32 %s16, %s23
      %p177 = scmp.eq.s32.totalorder %s176, 0
      %s179 = sadd.s32 %s178, 1
      %s180 = scalar_select %p177, %s178, %s179
      %p183 = pneg %p177
      %p184 = scmp.eq.s32.totalorder %s16, 1
      %p185 = por %p183, %p184
      %p186 = scmp.ne.s32.totalorder %s178, %s181
      %p187 = scmp.eq.s32.totalorder %s16, 0
      %p188 = por %p186, %p187
      %p189 = scmp.ne.s32.totalorder %s178, %s181
      %p190 = scmp.eq.s32.totalorder %s21, 1
      %p191 = por %p189, %p190
      %p192 = scmp.ne.s32.totalorder %s181, %s182
      %p193 = scmp.eq.s32.totalorder %s21, 0
      %p194 = por %p192, %p193
      %p195 = scmp.ne.s32.totalorder %s181, %s182
      %p196 = scmp.eq.s32.totalorder %s22, 1
      %p197 = por %p195, %p196
      %p199 = scmp.ne.s32.totalorder %s182, %s198
      %p200 = scmp.eq.s32.totalorder %s22, 0
      %p201 = por %p199, %p200
      %p202 = scmp.le.s32.totalorder 1, %s16
      %p203 = scmp.lt.s32.totalorder %s16, 3
      %p204 = pnand %p202, %p203
      %p205 = pneg %p204
      // Predicated region
      $region9: #{tpu_custom_call.1} parent=5 // pred_check
        _
      $region10: #{tpu_custom_call.1} parent=5 // pred_check_branch
        %207 = sbr.rel (%p204) target = $region12
      $region11: #{tpu_custom_call.1} parent=5 // pred_region
        %s208 = ssub.s32 %s16, 1
        // Predicated region
        $region13: #{tpu_custom_call.1} parent=11 // pred_check
          %p209 = pneg %p63
        $region14: #{tpu_custom_call.1} parent=11 // pred_check_branch
          %211 = sbr.rel (%p209) target = $region16
        $region15: #{tpu_custom_call.1} parent=11 // pred_region
          _
        $region16: #{tpu_custom_call.1} parent=11 // pred_fallthru
          _
        // Predicated region
        $region17: #{tpu_custom_call.1} parent=11 // pred_check
          %p212 = pneg %p84
        $region18: #{tpu_custom_call.1} parent=11 // pred_check_branch
          %214 = sbr.rel (%p212) target = $region20
        $region19: #{tpu_custom_call.1} parent=11 // pred_region
          _
        $region20: #{tpu_custom_call.1} parent=11 // pred_fallthru
          _
        // Predicated region
        $region21: #{tpu_custom_call.1} parent=11 // pred_check
          %p215 = pneg %p105
        $region22: #{tpu_custom_call.1} parent=11 // pred_check_branch
          %217 = sbr.rel (%p215) target = $region24
        $region23: #{tpu_custom_call.1} parent=11 // pred_region
          _
        $region24: #{tpu_custom_call.1} parent=11 // pred_fallthru
          _
        // Predicated region
        $region25: #{tpu_custom_call.1} parent=11 // pred_check
          %p218 = pneg %p126
        $region26: #{tpu_custom_call.1} parent=11 // pred_check_branch
          %220 = sbr.rel (%p218) target = $region28
        $region27: #{tpu_custom_call.1} parent=11 // pred_region
          _
        $region28: #{tpu_custom_call.1} parent=11 // pred_fallthru
          _
        // Predicated region
        $region29: #{tpu_custom_call.1} parent=11 // pred_check
          %p221 = pneg %p147
        $region30: #{tpu_custom_call.1} parent=11 // pred_check_branch
          %223 = sbr.rel (%p221) target = $region32
        $region31: #{tpu_custom_call.1} parent=11 // pred_region
          _
        $region32: #{tpu_custom_call.1} parent=11 // pred_fallthru
          _
        // Predicated region
        $region33: #{tpu_custom_call.1} parent=11 // pred_check
          %p224 = pneg %p168
        $region34: #{tpu_custom_call.1} parent=11 // pred_check_branch
          %226 = sbr.rel (%p224) target = $region36
        $region35: #{tpu_custom_call.1} parent=11 // pred_region
          _
        $region36: #{tpu_custom_call.1} parent=11 // pred_fallthru
          _
      $region12: #{tpu_custom_call.1} parent=5 // pred_fallthru
        _
      %p227 = scmp.lt.s32.totalorder %s16, 2
      // Predicated region
      $region37: #{tpu_custom_call.1} parent=5 // pred_check
        %p228 = pneg %p227
      $region38: #{tpu_custom_call.1} parent=5 // pred_check_branch
        %230 = sbr.rel (%p228) target = $region40
      $region39: #{tpu_custom_call.1} parent=5 // pred_region
        // Predicated region
        $region41: #{tpu_custom_call.1} parent=39 // pred_check
          %p231 = pneg %p36
        $region42: #{tpu_custom_call.1} parent=39 // pred_check_branch
          %233 = sbr.rel (%p231) target = $region44
        $region43: #{tpu_custom_call.1} parent=39 // pred_region
          %p234 = scmp.lt.s32.totalorder %s16, 1
          %s235 = scalar_select %p234, %s16, 1
          %s236 = smul.addr %s235, 8
          %s237 = scalar_lea.vmem %s0, %s236
        $region44: #{tpu_custom_call.1} parent=39 // pred_fallthru
          _
      $region40: #{tpu_custom_call.1} parent=5 // pred_fallthru
        _
      %p238 = scmp.le.s32.totalorder 1, %s16
      %p239 = scmp.lt.s32.totalorder %s16, 3
      %p240 = pnand %p238, %p239
      %p241 = pneg %p240
      // Predicated region
      $region45: #{tpu_custom_call.1} parent=5 // pred_check
        _
      $region46: #{tpu_custom_call.1} parent=5 // pred_check_branch
        %243 = sbr.rel (%p240) target = $region48
      $region47: #{tpu_custom_call.1} parent=5 // pred_region
        %s244 = ssub.s32 %s16, 1
        %p245 = scmp.lt.s32.totalorder %s21, 1
        %s246 = scalar_select %p245, %s21, 1
        %s247 = smul.addr %s246, 8
        %s248 = scalar_lea.vmem %s0, %s247
        %p249 = pneg %p42
        %p250 = pneg %p39
        %p251 = pneg %p63
        %p252 = pneg %p60
        %p253 = pneg %p84
        %p254 = pneg %p81
        %p255 = pneg %p105
        %p256 = pneg %p102
        %p257 = pneg %p126
        %p258 = pneg %p123
        %p259 = pneg %p147
        %p260 = pneg %p144
        %p261 = pneg %p168
        %p262 = pneg %p165
        %p263 = pneg %p194
        %p264 = pneg %p191
        %s265 = sand.u32 %s181, 1
        %s266 = scalar_lea.sflag [#allocation3], %s265
        %s267 = sand.u32 %s181, 1
        %s268 = smul.addr %s267, 8
        %s269 = scalar_lea.vmem [#allocation2], %s268
        %p270 = scmp.lt.s32.totalorder %s21, 1
        %s271 = scalar_select %p270, %s21, 1
        %s272 = smul.addr %s271, 8
        %s273 = scalar_lea.vmem %s0, %s272
        %v275 = vld [vmem:[%s273] sm:$0xff]
        %v276 = vpack.c.bf16 %v275, %v275
        %v277 = vld [vmem:[%s1] sm:$0xf]
        %v278 = vld [vmem:[%s1 + $0x4] sm:$0xf]
        %v279 = vld [vmem:[%s1 + $0x8] sm:$0xf]
        %v280 = vld [vmem:[%s1 + $0xc] sm:$0xf]
        %v281 = vld [vmem:[%s1 + $0x10] sm:$0xf]
        %v282 = vld [vmem:[%s1 + $0x14] sm:$0xf]
        %v283 = vld [vmem:[%s1 + $0x18] sm:$0xf]
        %v284 = vld [vmem:[%s1 + $0x1c] sm:$0xf]
        %v285 = vld [vmem:[%s1 + $0x20] sm:$0xf]
        %v286 = vld [vmem:[%s1 + $0x24] sm:$0xf]
        %v287 = vld [vmem:[%s1 + $0x28] sm:$0xf]
        %v288 = vld [vmem:[%s1 + $0x2c] sm:$0xf]
        %v289 = vld [vmem:[%s1 + $0x30] sm:$0xf]
        %v290 = vld [vmem:[%s1 + $0x34] sm:$0xf]
        %v291 = vld [vmem:[%s1 + $0x38] sm:$0xf]
        %v292 = vld [vmem:[%s1 + $0x3c] sm:$0xf]
        %v293 = vld [vmem:[%s1 + $0x40] sm:$0xf]
        %v294 = vld [vmem:[%s1 + $0x44] sm:$0xf]
        %v295 = vld [vmem:[%s1 + $0x48] sm:$0xf]
        %v296 = vld [vmem:[%s1 + $0x4c] sm:$0xf]
        %v297 = vld [vmem:[%s1 + $0x50] sm:$0xf]
        %v298 = vld [vmem:[%s1 + $0x54] sm:$0xf]
        %v299 = vld [vmem:[%s1 + $0x58] sm:$0xf]
        %v300 = vld [vmem:[%s1 + $0x5c] sm:$0xf]
        %v301 = vld [vmem:[%s1 + $0x60] sm:$0xf]
        %v302 = vld [vmem:[%s1 + $0x64] sm:$0xf]
        %v303 = vld [vmem:[%s1 + $0x68] sm:$0xf]
        %v304 = vld [vmem:[%s1 + $0x6c] sm:$0xf]
        %v305 = vld [vmem:[%s1 + $0x70] sm:$0xf]
        %v306 = vld [vmem:[%s1 + $0x74] sm:$0xf]
        %v307 = vld [vmem:[%s1 + $0x78] sm:$0xf]
        %v308 = vld [vmem:[%s1 + $0x7c] sm:$0xf]
        %v309 = vld [vmem:[%s1 + $0x80] sm:$0xf]
        %v310 = vld [vmem:[%s1 + $0x84] sm:$0xf]
        %v311 = vld [vmem:[%s1 + $0x88] sm:$0xf]
        %v312 = vld [vmem:[%s1 + $0x8c] sm:$0xf]
        %v313 = vld [vmem:[%s1 + $0x90] sm:$0xf]
        %v314 = vld [vmem:[%s1 + $0x94] sm:$0xf]
        %v315 = vld [vmem:[%s1 + $0x98] sm:$0xf]
        %v316 = vld [vmem:[%s1 + $0x9c] sm:$0xf]
        %v317 = vld [vmem:[%s1 + $0xa0] sm:$0xf]
        %v318 = vld [vmem:[%s1 + $0xa4] sm:$0xf]
        %v319 = vld [vmem:[%s1 + $0xa8] sm:$0xf]
        %v320 = vld [vmem:[%s1 + $0xac] sm:$0xf]
        %v321 = vld [vmem:[%s1 + $0xb0] sm:$0xf]
        %v322 = vld [vmem:[%s1 + $0xb4] sm:$0xf]
        %v323 = vld [vmem:[%s1 + $0xb8] sm:$0xf]
        %v324 = vld [vmem:[%s1 + $0xbc] sm:$0xf]
        %v329 = vunpack.c.l.b16 %v277
        %v330 = vunpack.c.l.b16 %v278
        %v331 = vunpack.c.l.b16 %v279
        %v332 = vunpack.c.l.b16 %v280
        %v333 = vpack.c.b16 %v330, %v329
        %v334 = vpack.c.b16 %v332, %v331
        %vm337 = vcmask 261120
        %v339 = vsel %vm337, %v276, 0
        %341 = vmatprep.subr.bf16.mxu0 0
        %342 = vmatpush1.bf16.msra.mxu0 %v333
        %343 = vmatprep.subr.bf16.mxu0 0
        %344 = vmatpush1.bf16.msra.mxu0 %v334
        %345 = vmatprep.subr.bf16.mxu0 0
        %346 = vmatpush1.bf16.msra.mxu0 0
        %347 = vmatprep.subr.bf16.mxu0 0
        %348 = vmatpush1.bf16.msra.mxu0 0
        %349 = vmatprep.subr.bf16.mxu0 0
        %350 = vmatpush1.bf16.msra.mxu0 0
        %351 = vmatprep.subr.bf16.mxu0 0
        %352 = vmatpush1.bf16.msra.mxu0 0
        %353 = vmatprep.subr.bf16.mxu0 0
        %354 = vmatpush1.bf16.msra.mxu0 0
        %355 = vmatprep.subr.bf16.mxu0 0
        %356 = vmatpush1.bf16.msra.mxu0 0
        %357 = vmatprep.subr.bf16.mxu0 0
        %358 = vmatpush1.bf16.msra.mxu0 0
        %359 = vmatprep.subr.bf16.mxu0 0
        %360 = vmatpush1.bf16.msra.mxu0 0
        %361 = vmatprep.subr.bf16.mxu0 0
        %362 = vmatpush1.bf16.msra.mxu0 0
        %363 = vmatprep.subr.bf16.mxu0 0
        %364 = vmatpush1.bf16.msra.mxu0 0
        %365 = vmatprep.subr.bf16.mxu0 0
        %366 = vmatpush1.bf16.msra.mxu0 0
        %367 = vmatprep.subr.bf16.mxu0 0
        %368 = vmatpush1.bf16.msra.mxu0 0
        %369 = vmatprep.subr.bf16.mxu0 0
        %370 = vmatpush1.bf16.msra.mxu0 0
        %371 = vmatprep.subr.bf16.mxu0 0
        %372 = vmatpush1.bf16.msra.mxu0 0
        %373 = vmatprep.mubr.bf16.mxu0 0
        %374 = vmatmul.mubr.bf16.gmra.mrb[0].mxu0 %v339
        %v375 = vpop.f32.mrb[0].mxu0
        %v376 = vadd.f32 0.0, %v375
        %v377 = vpop.f32.mrb[0].mxu0
        %v378 = vpop.f32.mrb[0].mxu0
        %v379 = vpop.f32.mrb[0].mxu0
        %380 = vdwg.mxu0
        %v385 = vunpack.c.l.b16 %v281
        %v386 = vunpack.c.l.b16 %v282
        %v387 = vunpack.c.l.b16 %v283
        %v388 = vunpack.c.l.b16 %v284
        %v389 = vpack.c.b16 %v386, %v385
        %v390 = vpack.c.b16 %v388, %v387
        %393 = vmatprep.subr.bf16.mxu0 0
        %394 = vmatpush1.bf16.msra.mxu0 %v389
        %395 = vmatprep.subr.bf16.mxu0 0
        %396 = vmatpush1.bf16.msra.mxu0 %v390
        %397 = vmatprep.subr.bf16.mxu0 0
        %398 = vmatpush1.bf16.msra.mxu0 0
        %399 = vmatprep.subr.bf16.mxu0 0
        %400 = vmatpush1.bf16.msra.mxu0 0
        %401 = vmatprep.subr.bf16.mxu0 0
        %402 = vmatpush1.bf16.msra.mxu0 0
        %403 = vmatprep.subr.bf16.mxu0 0
        %404 = vmatpush1.bf16.msra.mxu0 0
        %405 = vmatprep.subr.bf16.mxu0 0
        %406 = vmatpush1.bf16.msra.mxu0 0
        %407 = vmatprep.subr.bf16.mxu0 0
        %408 = vmatpush1.bf16.msra.mxu0 0
        %409 = vmatprep.subr.bf16.mxu0 0
        %410 = vmatpush1.bf16.msra.mxu0 0
        %411 = vmatprep.subr.bf16.mxu0 0
        %412 = vmatpush1.bf16.msra.mxu0 0
        %413 = vmatprep.subr.bf16.mxu0 0
        %414 = vmatpush1.bf16.msra.mxu0 0
        %415 = vmatprep.subr.bf16.mxu0 0
        %416 = vmatpush1.bf16.msra.mxu0 0
        %417 = vmatprep.subr.bf16.mxu0 0
        %418 = vmatpush1.bf16.msra.mxu0 0
        %419 = vmatprep.subr.bf16.mxu0 0
        %420 = vmatpush1.bf16.msra.mxu0 0
        %421 = vmatprep.subr.bf16.mxu0 0
        %422 = vmatpush1.bf16.msra.mxu0 0
        %423 = vmatprep.subr.bf16.mxu0 0
        %424 = vmatpush1.bf16.msra.mxu0 0
        %425 = vmatprep.mubr.bf16.mxu0 0
        %426 = vmatmul.mubr.bf16.gmra.mrb[0].mxu0 %v339
        %v427 = vpop.f32.mrb[0].mxu0
        %v428 = vadd.f32 0.0, %v427
        %v429 = vpop.f32.mrb[0].mxu0
        %v430 = vpop.f32.mrb[0].mxu0
        %v431 = vpop.f32.mrb[0].mxu0
        %432 = vdwg.mxu0
        %v437 = vunpack.c.l.b16 %v285
        %v438 = vunpack.c.l.b16 %v286
        %v439 = vunpack.c.l.b16 %v287
        %v440 = vunpack.c.l.b16 %v288
        %v441 = vpack.c.b16 %v438, %v437
        %v442 = vpack.c.b16 %v440, %v439
        %445 = vmatprep.subr.bf16.mxu0 0
        %446 = vmatpush1.bf16.msra.mxu0 %v441
        %447 = vmatprep.subr.bf16.mxu0 0
        %448 = vmatpush1.bf16.msra.mxu0 %v442
        %449 = vmatprep.subr.bf16.mxu0 0
        %450 = vmatpush1.bf16.msra.mxu0 0
        %451 = vmatprep.subr.bf16.mxu0 0
        %452 = vmatpush1.bf16.msra.mxu0 0
        %453 = vmatprep.subr.bf16.mxu0 0
        %454 = vmatpush1.bf16.msra.mxu0 0
        %455 = vmatprep.subr.bf16.mxu0 0
        %456 = vmatpush1.bf16.msra.mxu0 0
        %457 = vmatprep.subr.bf16.mxu0 0
        %458 = vmatpush1.bf16.msra.mxu0 0
        %459 = vmatprep.subr.bf16.mxu0 0
        %460 = vmatpush1.bf16.msra.mxu0 0
        %461 = vmatprep.subr.bf16.mxu0 0
        %462 = vmatpush1.bf16.msra.mxu0 0
        %463 = vmatprep.subr.bf16.mxu0 0
        %464 = vmatpush1.bf16.msra.mxu0 0
        %465 = vmatprep.subr.bf16.mxu0 0
        %466 = vmatpush1.bf16.msra.mxu0 0
        %467 = vmatprep.subr.bf16.mxu0 0
        %468 = vmatpush1.bf16.msra.mxu0 0
        %469 = vmatprep.subr.bf16.mxu0 0
        %470 = vmatpush1.bf16.msra.mxu0 0
        %471 = vmatprep.subr.bf16.mxu0 0
        %472 = vmatpush1.bf16.msra.mxu0 0
        %473 = vmatprep.subr.bf16.mxu0 0
        %474 = vmatpush1.bf16.msra.mxu0 0
        %475 = vmatprep.subr.bf16.mxu0 0
        %476 = vmatpush1.bf16.msra.mxu0 0
        %477 = vmatprep.mubr.bf16.mxu0 0
        %478 = vmatmul.mubr.bf16.gmra.mrb[0].mxu0 %v339
        %v479 = vpop.f32.mrb[0].mxu0
        %v480 = vadd.f32 0.0, %v479
        %v481 = vpop.f32.mrb[0].mxu0
        %v482 = vpop.f32.mrb[0].mxu0
        %v483 = vpop.f32.mrb[0].mxu0
        %484 = vdwg.mxu0
        %v489 = vunpack.c.l.b16 %v289
        %v490 = vunpack.c.l.b16 %v290
        %v491 = vunpack.c.l.b16 %v291
        %v492 = vunpack.c.l.b16 %v292
        %v493 = vpack.c.b16 %v490, %v489
        %v494 = vpack.c.b16 %v492, %v491
        %497 = vmatprep.subr.bf16.mxu0 0
        %498 = vmatpush1.bf16.msra.mxu0 %v493
        %499 = vmatprep.subr.bf16.mxu0 0
        %500 = vmatpush1.bf16.msra.mxu0 %v494
        %501 = vmatprep.subr.bf16.mxu0 0
        %502 = vmatpush1.bf16.msra.mxu0 0
        %503 = vmatprep.subr.bf16.mxu0 0
        %504 = vmatpush1.bf16.msra.mxu0 0
        %505 = vmatprep.subr.bf16.mxu0 0
        %506 = vmatpush1.bf16.msra.mxu0 0
        %507 = vmatprep.subr.bf16.mxu0 0
        %508 = vmatpush1.bf16.msra.mxu0 0
        %509 = vmatprep.subr.bf16.mxu0 0
        %510 = vmatpush1.bf16.msra.mxu0 0
        %511 = vmatprep.subr.bf16.mxu0 0
        %512 = vmatpush1.bf16.msra.mxu0 0
        %513 = vmatprep.subr.bf16.mxu0 0
        %514 = vmatpush1.bf16.msra.mxu0 0
        %515 = vmatprep.subr.bf16.mxu0 0
        %516 = vmatpush1.bf16.msra.mxu0 0
        %517 = vmatprep.subr.bf16.mxu0 0
        %518 = vmatpush1.bf16.msra.mxu0 0
        %519 = vmatprep.subr.bf16.mxu0 0
        %520 = vmatpush1.bf16.msra.mxu0 0
        %521 = vmatprep.subr.bf16.mxu0 0
        %522 = vmatpush1.bf16.msra.mxu0 0
        %523 = vmatprep.subr.bf16.mxu0 0
        %524 = vmatpush1.bf16.msra.mxu0 0
        %525 = vmatprep.subr.bf16.mxu0 0
        %526 = vmatpush1.bf16.msra.mxu0 0
        %527 = vmatprep.subr.bf16.mxu0 0
        %528 = vmatpush1.bf16.msra.mxu0 0
        %529 = vmatprep.mubr.bf16.mxu0 0
        %530 = vmatmul.mubr.bf16.gmra.mrb[0].mxu0 %v339
        %v531 = vpop.f32.mrb[0].mxu0
        %v532 = vadd.f32 0.0, %v531
        %v533 = vpop.f32.mrb[0].mxu0
        %v534 = vpop.f32.mrb[0].mxu0
        %v535 = vpop.f32.mrb[0].mxu0
        %536 = vdwg.mxu0
        %v541 = vunpack.c.l.b16 %v293
        %v542 = vunpack.c.l.b16 %v294
        %v543 = vunpack.c.l.b16 %v295
        %v544 = vunpack.c.l.b16 %v296
        %v545 = vpack.c.b16 %v542, %v541
        %v546 = vpack.c.b16 %v544, %v543
        %549 = vmatprep.subr.bf16.mxu0 0
        %550 = vmatpush1.bf16.msra.mxu0 %v545
        %551 = vmatprep.subr.bf16.mxu0 0
        %552 = vmatpush1.bf16.msra.mxu0 %v546
        %553 = vmatprep.subr.bf16.mxu0 0
        %554 = vmatpush1.bf16.msra.mxu0 0
        %555 = vmatprep.subr.bf16.mxu0 0
        %556 = vmatpush1.bf16.msra.mxu0 0
        %557 = vmatprep.subr.bf16.mxu0 0
        %558 = vmatpush1.bf16.msra.mxu0 0
        %559 = vmatprep.subr.bf16.mxu0 0
        %560 = vmatpush1.bf16.msra.mxu0 0
        %561 = vmatprep.subr.bf16.mxu0 0
        %562 = vmatpush1.bf16.msra.mxu0 0
        %563 = vmatprep.subr.bf16.mxu0 0
        %564 = vmatpush1.bf16.msra.mxu0 0
        %565 = vmatprep.subr.bf16.mxu0 0
        %566 = vmatpush1.bf16.msra.mxu0 0
        %567 = vmatprep.subr.bf16.mxu0 0
        %568 = vmatpush1.bf16.msra.mxu0 0
        %569 = vmatprep.subr.bf16.mxu0 0
        %570 = vmatpush1.bf16.msra.mxu0 0
        %571 = vmatprep.subr.bf16.mxu0 0
        %572 = vmatpush1.bf16.msra.mxu0 0
        %573 = vmatprep.subr.bf16.mxu0 0
        %574 = vmatpush1.bf16.msra.mxu0 0
        %575 = vmatprep.subr.bf16.mxu0 0
        %576 = vmatpush1.bf16.msra.mxu0 0
        %577 = vmatprep.subr.bf16.mxu0 0
        %578 = vmatpush1.bf16.msra.mxu0 0
        %579 = vmatprep.subr.bf16.mxu0 0
        %580 = vmatpush1.bf16.msra.mxu0 0
        %581 = vmatprep.mubr.bf16.mxu0 0
        %582 = vmatmul.mubr.bf16.gmra.mrb[0].mxu0 %v339
        %v583 = vpop.f32.mrb[0].mxu0
        %v584 = vadd.f32 0.0, %v583
        %v585 = vpop.f32.mrb[0].mxu0
        %v586 = vpop.f32.mrb[0].mxu0
        %v587 = vpop.f32.mrb[0].mxu0
        %588 = vdwg.mxu0
        %v593 = vunpack.c.l.b16 %v297
        %v594 = vunpack.c.l.b16 %v298
        %v595 = vunpack.c.l.b16 %v299
        %v596 = vunpack.c.l.b16 %v300
        %v597 = vpack.c.b16 %v594, %v593
        %v598 = vpack.c.b16 %v596, %v595
        %601 = vmatprep.subr.bf16.mxu0 0
        %602 = vmatpush1.bf16.msra.mxu0 %v597
        %603 = vmatprep.subr.bf16.mxu0 0
        %604 = vmatpush1.bf16.msra.mxu0 %v598
        %605 = vmatprep.subr.bf16.mxu0 0
        %606 = vmatpush1.bf16.msra.mxu0 0
        %607 = vmatprep.subr.bf16.mxu0 0
        %608 = vmatpush1.bf16.msra.mxu0 0
        %609 = vmatprep.subr.bf16.mxu0 0
        %610 = vmatpush1.bf16.msra.mxu0 0
        %611 = vmatprep.subr.bf16.mxu0 0
        %612 = vmatpush1.bf16.msra.mxu0 0
        %613 = vmatprep.subr.bf16.mxu0 0
        %614 = vmatpush1.bf16.msra.mxu0 0
        %615 = vmatprep.subr.bf16.mxu0 0
        %616 = vmatpush1.bf16.msra.mxu0 0
        %617 = vmatprep.subr.bf16.mxu0 0
        %618 = vmatpush1.bf16.msra.mxu0 0
        %619 = vmatprep.subr.bf16.mxu0 0
        %620 = vmatpush1.bf16.msra.mxu0 0
        %621 = vmatprep.subr.bf16.mxu0 0
        %622 = vmatpush1.bf16.msra.mxu0 0
        %623 = vmatprep.subr.bf16.mxu0 0
        %624 = vmatpush1.bf16.msra.mxu0 0
        %625 = vmatprep.subr.bf16.mxu0 0
        %626 = vmatpush1.bf16.msra.mxu0 0
        %627 = vmatprep.subr.bf16.mxu0 0
        %628 = vmatpush1.bf16.msra.mxu0 0
        %629 = vmatprep.subr.bf16.mxu0 0
        %630 = vmatpush1.bf16.msra.mxu0 0
        %631 = vmatprep.subr.bf16.mxu0 0
        %632 = vmatpush1.bf16.msra.mxu0 0
        %633 = vmatprep.mubr.bf16.mxu0 0
        %634 = vmatmul.mubr.bf16.gmra.mrb[0].mxu0 %v339
        %v635 = vpop.f32.mrb[0].mxu0
        %v636 = vadd.f32 0.0, %v635
        %v637 = vpop.f32.mrb[0].mxu0
        %v638 = vpop.f32.mrb[0].mxu0
        %v639 = vpop.f32.mrb[0].mxu0
        %640 = vdwg.mxu0
        %v645 = vunpack.c.l.b16 %v301
        %v646 = vunpack.c.l.b16 %v302
        %v647 = vunpack.c.l.b16 %v303
        %v648 = vunpack.c.l.b16 %v304
        %v649 = vpack.c.b16 %v646, %v645
        %v650 = vpack.c.b16 %v648, %v647
        %653 = vmatprep.subr.bf16.mxu0 0
        %654 = vmatpush1.bf16.msra.mxu0 %v649
        %655 = vmatprep.subr.bf16.mxu0 0
        %656 = vmatpush1.bf16.msra.mxu0 %v650
        %657 = vmatprep.subr.bf16.mxu0 0
        %658 = vmatpush1.bf16.msra.mxu0 0
        %659 = vmatprep.subr.bf16.mxu0 0
        %660 = vmatpush1.bf16.msra.mxu0 0
        %661 = vmatprep.subr.bf16.mxu0 0
        %662 = vmatpush1.bf16.msra.mxu0 0
        %663 = vmatprep.subr.bf16.mxu0 0
        %664 = vmatpush1.bf16.msra.mxu0 0
        %665 = vmatprep.subr.bf16.mxu0 0
        %666 = vmatpush1.bf16.msra.mxu0 0
        %667 = vmatprep.subr.bf16.mxu0 0
        %668 = vmatpush1.bf16.msra.mxu0 0
        %669 = vmatprep.subr.bf16.mxu0 0
        %670 = vmatpush1.bf16.msra.mxu0 0
        %671 = vmatprep.subr.bf16.mxu0 0
        %672 = vmatpush1.bf16.msra.mxu0 0
        %673 = vmatprep.subr.bf16.mxu0 0
        %674 = vmatpush1.bf16.msra.mxu0 0
        %675 = vmatprep.subr.bf16.mxu0 0
        %676 = vmatpush1.bf16.msra.mxu0 0
        %677 = vmatprep.subr.bf16.mxu0 0
        %678 = vmatpush1.bf16.msra.mxu0 0
        %679 = vmatprep.subr.bf16.mxu0 0
        %680 = vmatpush1.bf16.msra.mxu0 0
        %681 = vmatprep.subr.bf16.mxu0 0
        %682 = vmatpush1.bf16.msra.mxu0 0
        %683 = vmatprep.subr.bf16.mxu0 0
        %684 = vmatpush1.bf16.msra.mxu0 0
        %685 = vmatprep.mubr.bf16.mxu0 0
        %686 = vmatmul.mubr.bf16.gmra.mrb[0].mxu0 %v339
        %v687 = vpop.f32.mrb[0].mxu0
        %v688 = vadd.f32 0.0, %v687
        %v689 = vpop.f32.mrb[0].mxu0
        %v690 = vpop.f32.mrb[0].mxu0
        %v691 = vpop.f32.mrb[0].mxu0
        %692 = vdwg.mxu0
        %v697 = vunpack.c.l.b16 %v305
        %v698 = vunpack.c.l.b16 %v306
        %v699 = vunpack.c.l.b16 %v307
        %v700 = vunpack.c.l.b16 %v308
        %v701 = vpack.c.b16 %v698, %v697
        %v702 = vpack.c.b16 %v700, %v699
        %705 = vmatprep.subr.bf16.mxu0 0
        %706 = vmatpush1.bf16.msra.mxu0 %v701
        %707 = vmatprep.subr.bf16.mxu0 0
        %708 = vmatpush1.bf16.msra.mxu0 %v702
        %709 = vmatprep.subr.bf16.mxu0 0
        %710 = vmatpush1.bf16.msra.mxu0 0
        %711 = vmatprep.subr.bf16.mxu0 0
        %712 = vmatpush1.bf16.msra.mxu0 0
        %713 = vmatprep.subr.bf16.mxu0 0
        %714 = vmatpush1.bf16.msra.mxu0 0
        %715 = vmatprep.subr.bf16.mxu0 0
        %716 = vmatpush1.bf16.msra.mxu0 0
        %717 = vmatprep.subr.bf16.mxu0 0
        %718 = vmatpush1.bf16.msra.mxu0 0
        %719 = vmatprep.subr.bf16.mxu0 0
        %720 = vmatpush1.bf16.msra.mxu0 0
        %721 = vmatprep.subr.bf16.mxu0 0
        %722 = vmatpush1.bf16.msra.mxu0 0
        %723 = vmatprep.subr.bf16.mxu0 0
        %724 = vmatpush1.bf16.msra.mxu0 0
        %725 = vmatprep.subr.bf16.mxu0 0
        %726 = vmatpush1.bf16.msra.mxu0 0
        %727 = vmatprep.subr.bf16.mxu0 0
        %728 = vmatpush1.bf16.msra.mxu0 0
        %729 = vmatprep.subr.bf16.mxu0 0
        %730 = vmatpush1.bf16.msra.mxu0 0
        %731 = vmatprep.subr.bf16.mxu0 0
        %732 = vmatpush1.bf16.msra.mxu0 0
        %733 = vmatprep.subr.bf16.mxu0 0
        %734 = vmatpush1.bf16.msra.mxu0 0
        %735 = vmatprep.subr.bf16.mxu0 0
        %736 = vmatpush1.bf16.msra.mxu0 0
        %737 = vmatprep.mubr.bf16.mxu0 0
        %738 = vmatmul.mubr.bf16.gmra.mrb[0].mxu0 %v339
        %v739 = vpop.f32.mrb[0].mxu0
        %v740 = vadd.f32 0.0, %v739
        %v741 = vpop.f32.mrb[0].mxu0
        %v742 = vpop.f32.mrb[0].mxu0
        %v743 = vpop.f32.mrb[0].mxu0
        %744 = vdwg.mxu0
        %v749 = vunpack.c.l.b16 %v309
        %v750 = vunpack.c.l.b16 %v310
        %v751 = vunpack.c.l.b16 %v311
        %v752 = vunpack.c.l.b16 %v312
        %v753 = vpack.c.b16 %v750, %v749
        %v754 = vpack.c.b16 %v752, %v751
        %757 = vmatprep.subr.bf16.mxu0 0
        %758 = vmatpush1.bf16.msra.mxu0 %v753
        %759 = vmatprep.subr.bf16.mxu0 0
        %760 = vmatpush1.bf16.msra.mxu0 %v754
        %761 = vmatprep.subr.bf16.mxu0 0
        %762 = vmatpush1.bf16.msra.mxu0 0
        %763 = vmatprep.subr.bf16.mxu0 0
        %764 = vmatpush1.bf16.msra.mxu0 0
        %765 = vmatprep.subr.bf16.mxu0 0
        %766 = vmatpush1.bf16.msra.mxu0 0
        %767 = vmatprep.subr.bf16.mxu0 0
        %768 = vmatpush1.bf16.msra.mxu0 0
        %769 = vmatprep.subr.bf16.mxu0 0
        %770 = vmatpush1.bf16.msra.mxu0 0
        %771 = vmatprep.subr.bf16.mxu0 0
        %772 = vmatpush1.bf16.msra.mxu0 0
        %773 = vmatprep.subr.bf16.mxu0 0
        %774 = vmatpush1.bf16.msra.mxu0 0
        %775 = vmatprep.subr.bf16.mxu0 0
        %776 = vmatpush1.bf16.msra.mxu0 0
        %777 = vmatprep.subr.bf16.mxu0 0
        %778 = vmatpush1.bf16.msra.mxu0 0
        %779 = vmatprep.subr.bf16.mxu0 0
        %780 = vmatpush1.bf16.msra.mxu0 0
        %781 = vmatprep.subr.bf16.mxu0 0
        %782 = vmatpush1.bf16.msra.mxu0 0
        %783 = vmatprep.subr.bf16.mxu0 0
        %784 = vmatpush1.bf16.msra.mxu0 0
        %785 = vmatprep.subr.bf16.mxu0 0
        %786 = vmatpush1.bf16.msra.mxu0 0
        %787 = vmatprep.subr.bf16.mxu0 0
        %788 = vmatpush1.bf16.msra.mxu0 0
        %789 = vmatprep.mubr.bf16.mxu0 0
        %790 = vmatmul.mubr.bf16.gmra.mrb[0].mxu0 %v339
        %v791 = vpop.f32.mrb[0].mxu0
        %v792 = vadd.f32 0.0, %v791
        %v793 = vpop.f32.mrb[0].mxu0
        %v794 = vpop.f32.mrb[0].mxu0
        %v795 = vpop.f32.mrb[0].mxu0
        %796 = vdwg.mxu0
        %v801 = vunpack.c.l.b16 %v313
        %v802 = vunpack.c.l.b16 %v314
        %v803 = vunpack.c.l.b16 %v315
        %v804 = vunpack.c.l.b16 %v316
        %v805 = vpack.c.b16 %v802, %v801
        %v806 = vpack.c.b16 %v804, %v803
        %809 = vmatprep.subr.bf16.mxu0 0
        %810 = vmatpush1.bf16.msra.mxu0 %v805
        %811 = vmatprep.subr.bf16.mxu0 0
        %812 = vmatpush1.bf16.msra.mxu0 %v806
        %813 = vmatprep.subr.bf16.mxu0 0
        %814 = vmatpush1.bf16.msra.mxu0 0
        %815 = vmatprep.subr.bf16.mxu0 0
        %816 = vmatpush1.bf16.msra.mxu0 0
        %817 = vmatprep.subr.bf16.mxu0 0
        %818 = vmatpush1.bf16.msra.mxu0 0
        %819 = vmatprep.subr.bf16.mxu0 0
        %820 = vmatpush1.bf16.msra.mxu0 0
        %821 = vmatprep.subr.bf16.mxu0 0
        %822 = vmatpush1.bf16.msra.mxu0 0
        %823 = vmatprep.subr.bf16.mxu0 0
        %824 = vmatpush1.bf16.msra.mxu0 0
        %825 = vmatprep.subr.bf16.mxu0 0
        %826 = vmatpush1.bf16.msra.mxu0 0
        %827 = vmatprep.subr.bf16.mxu0 0
        %828 = vmatpush1.bf16.msra.mxu0 0
        %829 = vmatprep.subr.bf16.mxu0 0
        %830 = vmatpush1.bf16.msra.mxu0 0
        %831 = vmatprep.subr.bf16.mxu0 0
        %832 = vmatpush1.bf16.msra.mxu0 0
        %833 = vmatprep.subr.bf16.mxu0 0
        %834 = vmatpush1.bf16.msra.mxu0 0
        %835 = vmatprep.subr.bf16.mxu0 0
        %836 = vmatpush1.bf16.msra.mxu0 0
        %837 = vmatprep.subr.bf16.mxu0 0
        %838 = vmatpush1.bf16.msra.mxu0 0
        %839 = vmatprep.subr.bf16.mxu0 0
        %840 = vmatpush1.bf16.msra.mxu0 0
        %841 = vmatprep.mubr.bf16.mxu0 0
        %842 = vmatmul.mubr.bf16.gmra.mrb[0].mxu0 %v339
        %v843 = vpop.f32.mrb[0].mxu0
        %v844 = vadd.f32 0.0, %v843
        %v845 = vpop.f32.mrb[0].mxu0
        %v846 = vpop.f32.mrb[0].mxu0
        %v847 = vpop.f32.mrb[0].mxu0
        %848 = vdwg.mxu0
        %v853 = vunpack.c.l.b16 %v317
        %v854 = vunpack.c.l.b16 %v318
        %v855 = vunpack.c.l.b16 %v319
        %v856 = vunpack.c.l.b16 %v320
        %v857 = vpack.c.b16 %v854, %v853
        %v858 = vpack.c.b16 %v856, %v855
        %861 = vmatprep.subr.bf16.mxu0 0
        %862 = vmatpush1.bf16.msra.mxu0 %v857
        %863 = vmatprep.subr.bf16.mxu0 0
        %864 = vmatpush1.bf16.msra.mxu0 %v858
        %865 = vmatprep.subr.bf16.mxu0 0
        %866 = vmatpush1.bf16.msra.mxu0 0
        %867 = vmatprep.subr.bf16.mxu0 0
        %868 = vmatpush1.bf16.msra.mxu0 0
        %869 = vmatprep.subr.bf16.mxu0 0
        %870 = vmatpush1.bf16.msra.mxu0 0
        %871 = vmatprep.subr.bf16.mxu0 0
        %872 = vmatpush1.bf16.msra.mxu0 0
        %873 = vmatprep.subr.bf16.mxu0 0
        %874 = vmatpush1.bf16.msra.mxu0 0
        %875 = vmatprep.subr.bf16.mxu0 0
        %876 = vmatpush1.bf16.msra.mxu0 0
        %877 = vmatprep.subr.bf16.mxu0 0
        %878 = vmatpush1.bf16.msra.mxu0 0
        %879 = vmatprep.subr.bf16.mxu0 0
        %880 = vmatpush1.bf16.msra.mxu0 0
        %881 = vmatprep.subr.bf16.mxu0 0
        %882 = vmatpush1.bf16.msra.mxu0 0
        %883 = vmatprep.subr.bf16.mxu0 0
        %884 = vmatpush1.bf16.msra.mxu0 0
        %885 = vmatprep.subr.bf16.mxu0 0
        %886 = vmatpush1.bf16.msra.mxu0 0
        %887 = vmatprep.subr.bf16.mxu0 0
        %888 = vmatpush1.bf16.msra.mxu0 0
        %889 = vmatprep.subr.bf16.mxu0 0
        %890 = vmatpush1.bf16.msra.mxu0 0
        %891 = vmatprep.subr.bf16.mxu0 0
        %892 = vmatpush1.bf16.msra.mxu0 0
        %893 = vmatprep.mubr.bf16.mxu0 0
        %894 = vmatmul.mubr.bf16.gmra.mrb[0].mxu0 %v339
        %v895 = vpop.f32.mrb[0].mxu0
        %v896 = vadd.f32 0.0, %v895
        %v897 = vpop.f32.mrb[0].mxu0
        %v898 = vpop.f32.mrb[0].mxu0
        %v899 = vpop.f32.mrb[0].mxu0
        %900 = vdwg.mxu0
        %v905 = vunpack.c.l.b16 %v321
        %v906 = vunpack.c.l.b16 %v322
        %v907 = vunpack.c.l.b16 %v323
        %v908 = vunpack.c.l.b16 %v324
        %v909 = vpack.c.b16 %v906, %v905
        %v910 = vpack.c.b16 %v908, %v907
        %913 = vmatprep.subr.bf16.mxu0 0
        %914 = vmatpush1.bf16.msra.mxu0 %v909
        %915 = vmatprep.subr.bf16.mxu0 0
        %916 = vmatpush1.bf16.msra.mxu0 %v910
        %917 = vmatprep.subr.bf16.mxu0 0
        %918 = vmatpush1.bf16.msra.mxu0 0
        %919 = vmatprep.subr.bf16.mxu0 0
        %920 = vmatpush1.bf16.msra.mxu0 0
        %921 = vmatprep.subr.bf16.mxu0 0
        %922 = vmatpush1.bf16.msra.mxu0 0
        %923 = vmatprep.subr.bf16.mxu0 0
        %924 = vmatpush1.bf16.msra.mxu0 0
        %925 = vmatprep.subr.bf16.mxu0 0
        %926 = vmatpush1.bf16.msra.mxu0 0
        %927 = vmatprep.subr.bf16.mxu0 0
        %928 = vmatpush1.bf16.msra.mxu0 0
        %929 = vmatprep.subr.bf16.mxu0 0
        %930 = vmatpush1.bf16.msra.mxu0 0
        %931 = vmatprep.subr.bf16.mxu0 0
        %932 = vmatpush1.bf16.msra.mxu0 0
        %933 = vmatprep.subr.bf16.mxu0 0
        %934 = vmatpush1.bf16.msra.mxu0 0
        %935 = vmatprep.subr.bf16.mxu0 0
        %936 = vmatpush1.bf16.msra.mxu0 0
        %937 = vmatprep.subr.bf16.mxu0 0
        %938 = vmatpush1.bf16.msra.mxu0 0
        %939 = vmatprep.subr.bf16.mxu0 0
        %940 = vmatpush1.bf16.msra.mxu0 0
        %941 = vmatprep.subr.bf16.mxu0 0
        %942 = vmatpush1.bf16.msra.mxu0 0
        %943 = vmatprep.subr.bf16.mxu0 0
        %944 = vmatpush1.bf16.msra.mxu0 0
        %945 = vmatprep.mubr.bf16.mxu0 0
        %946 = vmatmul.mubr.bf16.gmra.mrb[0].mxu0 %v339
        %v947 = vpop.f32.mrb[0].mxu0
        %v948 = vadd.f32 0.0, %v947
        %v949 = vpop.f32.mrb[0].mxu0
        %v950 = vpop.f32.mrb[0].mxu0
        %v951 = vpop.f32.mrb[0].mxu0
        %952 = vdwg.mxu0
        %v953 = vld [vmem:[%s3] sm:$0xf]
        %v954 = vld [vmem:[%s3 + $0x4] sm:$0xf]
        %v955 = vld [vmem:[%s3 + $0x8] sm:$0xf]
        %v956 = vld [vmem:[%s3 + $0xc] sm:$0xf]
        %v961 = vunpack.c.l.b16 %v953
        %v962 = vunpack.c.l.b16 %v954
        %v963 = vunpack.c.l.b16 %v955
        %v964 = vunpack.c.l.b16 %v956
        %v965 = vpack.c.b16 %v962, %v961
        %v966 = vpack.c.b16 %v964, %v963
        %969 = vmatprep.subr.bf16.mxu0 0
        %970 = vmatpush1.bf16.msra.mxu0 %v965
        %971 = vmatprep.subr.bf16.mxu0 0
        %972 = vmatpush1.bf16.msra.mxu0 %v966
        %973 = vmatprep.subr.bf16.mxu0 0
        %974 = vmatpush1.bf16.msra.mxu0 0
        %975 = vmatprep.subr.bf16.mxu0 0
        %976 = vmatpush1.bf16.msra.mxu0 0
        %977 = vmatprep.subr.bf16.mxu0 0
        %978 = vmatpush1.bf16.msra.mxu0 0
        %979 = vmatprep.subr.bf16.mxu0 0
        %980 = vmatpush1.bf16.msra.mxu0 0
        %981 = vmatprep.subr.bf16.mxu0 0
        %982 = vmatpush1.bf16.msra.mxu0 0
        %983 = vmatprep.subr.bf16.mxu0 0
        %984 = vmatpush1.bf16.msra.mxu0 0
        %985 = vmatprep.subr.bf16.mxu0 0
        %986 = vmatpush1.bf16.msra.mxu0 0
        %987 = vmatprep.subr.bf16.mxu0 0
        %988 = vmatpush1.bf16.msra.mxu0 0
        %989 = vmatprep.subr.bf16.mxu0 0
        %990 = vmatpush1.bf16.msra.mxu0 0
        %991 = vmatprep.subr.bf16.mxu0 0
        %992 = vmatpush1.bf16.msra.mxu0 0
        %993 = vmatprep.subr.bf16.mxu0 0
        %994 = vmatpush1.bf16.msra.mxu0 0
        %995 = vmatprep.subr.bf16.mxu0 0
        %996 = vmatpush1.bf16.msra.mxu0 0
        %997 = vmatprep.subr.bf16.mxu0 0
        %998 = vmatpush1.bf16.msra.mxu0 0
        %999 = vmatprep.subr.bf16.mxu0 0
        %1000 = vmatpush1.bf16.msra.mxu0 0
        %1001 = vmatprep.mubr.bf16.mxu0 0
        %1002 = vmatmul.mubr.bf16.gmra.mrb[0].mxu0 %v339
        %v1003 = vpop.f32.mrb[0].mxu0
        %v1004 = vadd.f32 0.0, %v1003
        %v1005 = vpop.f32.mrb[0].mxu0
        %v1006 = vpop.f32.mrb[0].mxu0
        %v1007 = vpop.f32.mrb[0].mxu0
        %1008 = vdwg.mxu0
        %v1009 = vpack.c.bf16 %v1004, %v1004
        %v1010 = vld [vmem:[%s4] sm:$0xf]
        %v1011 = vld [vmem:[%s4 + $0x4] sm:$0xf]
        %v1012 = vld [vmem:[%s4 + $0x8] sm:$0xf]
        %v1013 = vld [vmem:[%s4 + $0xc] sm:$0xf]
        %v1018 = vunpack.c.l.b16 %v1010
        %v1019 = vunpack.c.l.b16 %v1011
        %v1020 = vunpack.c.l.b16 %v1012
        %v1021 = vunpack.c.l.b16 %v1013
        %v1022 = vpack.c.b16 %v1019, %v1018
        %v1023 = vpack.c.b16 %v1021, %v1020
        %1026 = vmatprep.subr.bf16.mxu0 0
        %1027 = vmatpush1.bf16.msra.mxu0 %v1022
        %1028 = vmatprep.subr.bf16.mxu0 0
        %1029 = vmatpush1.bf16.msra.mxu0 %v1023
        %1030 = vmatprep.subr.bf16.mxu0 0
        %1031 = vmatpush1.bf16.msra.mxu0 0
        %1032 = vmatprep.subr.bf16.mxu0 0
        %1033 = vmatpush1.bf16.msra.mxu0 0
        %1034 = vmatprep.subr.bf16.mxu0 0
        %1035 = vmatpush1.bf16.msra.mxu0 0
        %1036 = vmatprep.subr.bf16.mxu0 0
        %1037 = vmatpush1.bf16.msra.mxu0 0
        %1038 = vmatprep.subr.bf16.mxu0 0
        %1039 = vmatpush1.bf16.msra.mxu0 0
        %1040 = vmatprep.subr.bf16.mxu0 0
        %1041 = vmatpush1.bf16.msra.mxu0 0
        %1042 = vmatprep.subr.bf16.mxu0 0
        %1043 = vmatpush1.bf16.msra.mxu0 0
        %1044 = vmatprep.subr.bf16.mxu0 0
        %1045 = vmatpush1.bf16.msra.mxu0 0
        %1046 = vmatprep.subr.bf16.mxu0 0
        %1047 = vmatpush1.bf16.msra.mxu0 0
        %1048 = vmatprep.subr.bf16.mxu0 0
        %1049 = vmatpush1.bf16.msra.mxu0 0
        %1050 = vmatprep.subr.bf16.mxu0 0
        %1051 = vmatpush1.bf16.msra.mxu0 0
        %1052 = vmatprep.subr.bf16.mxu0 0
        %1053 = vmatpush1.bf16.msra.mxu0 0
        %1054 = vmatprep.subr.bf16.mxu0 0
        %1055 = vmatpush1.bf16.msra.mxu0 0
        %1056 = vmatprep.subr.bf16.mxu0 0
        %1057 = vmatpush1.bf16.msra.mxu0 0
        %1058 = vmatprep.mubr.bf16.mxu0 0
        %1059 = vmatmul.mubr.bf16.gmra.mrb[0].mxu0 %v339
        %v1060 = vpop.f32.mrb[0].mxu0
        %v1061 = vadd.f32 0.0, %v1060
        %v1062 = vpop.f32.mrb[0].mxu0
        %v1063 = vpop.f32.mrb[0].mxu0
        %v1064 = vpop.f32.mrb[0].mxu0
        %1065 = vdwg.mxu0
        %v1066 = vpack.c.bf16 %v1061, %v1061
        %v1067 = vld [vmem:[%s5] sm:$0xf]
        %v1068 = vld [vmem:[%s5 + $0x4] sm:$0xf]
        %v1069 = vld [vmem:[%s5 + $0x8] sm:$0xf]
        %v1070 = vld [vmem:[%s5 + $0xc] sm:$0xf]
        %v1071 = vld [vmem:[%s5 + $0x10] sm:$0xf]
        %v1072 = vld [vmem:[%s5 + $0x14] sm:$0xf]
        %v1073 = vld [vmem:[%s5 + $0x18] sm:$0xf]
        %v1074 = vld [vmem:[%s5 + $0x1c] sm:$0xf]
        %v1077 = vunpack.c.l.b16 %v1067
        %v1078 = vunpack.c.l.b16 %v1068
        %v1079 = vpack.c.b16 %v1078, %v1077
        %vm1081 = vcmask 130048
        %v1083 = vsel %vm1081, %v1009, 0
        %1085 = vmatprep.subr.bf16.mxu0 0
        %1086 = vmatpush1.bf16.msra.mxu0 %v1079
        %1087 = vmatprep.subr.bf16.mxu0 0
        %1088 = vmatpush1.bf16.msra.mxu0 0
        %1089 = vmatprep.subr.bf16.mxu0 0
        %1090 = vmatpush1.bf16.msra.mxu0 0
        %1091 = vmatprep.subr.bf16.mxu0 0
        %1092 = vmatpush1.bf16.msra.mxu0 0
        %1093 = vmatprep.subr.bf16.mxu0 0
        %1094 = vmatpush1.bf16.msra.mxu0 0
        %1095 = vmatprep.subr.bf16.mxu0 0
        %1096 = vmatpush1.bf16.msra.mxu0 0
        %1097 = vmatprep.subr.bf16.mxu0 0
        %1098 = vmatpush1.bf16.msra.mxu0 0
        %1099 = vmatprep.subr.bf16.mxu0 0
        %1100 = vmatpush1.bf16.msra.mxu0 0
        %1101 = vmatprep.subr.bf16.mxu0 0
        %1102 = vmatpush1.bf16.msra.mxu0 0
        %1103 = vmatprep.subr.bf16.mxu0 0
        %1104 = vmatpush1.bf16.msra.mxu0 0
        %1105 = vmatprep.subr.bf16.mxu0 0
        %1106 = vmatpush1.bf16.msra.mxu0 0
        %1107 = vmatprep.subr.bf16.mxu0 0
        %1108 = vmatpush1.bf16.msra.mxu0 0
        %1109 = vmatprep.subr.bf16.mxu0 0
        %1110 = vmatpush1.bf16.msra.mxu0 0
        %1111 = vmatprep.subr.bf16.mxu0 0
        %1112 = vmatpush1.bf16.msra.mxu0 0
        %1113 = vmatprep.subr.bf16.mxu0 0
        %1114 = vmatpush1.bf16.msra.mxu0 0
        %1115 = vmatprep.subr.bf16.mxu0 0
        %1116 = vmatpush1.bf16.msra.mxu0 0
        %1117 = vmatprep.mubr.bf16.mxu0 0
        %1118 = vmatmul.mubr.bf16.gmra.mrb[0].mxu0 %v1083
        %v1119 = vpop.f32.mrb[0].mxu0
        %v1120 = vadd.f32 0.0, %v1119
        %v1121 = vpop.f32.mrb[0].mxu0
        %v1122 = vpop.f32.mrb[0].mxu0
        %v1123 = vpop.f32.mrb[0].mxu0
        %1124 = vdwg.mxu0
        %v1127 = vunpack.c.l.b16 %v1069
        %v1128 = vunpack.c.l.b16 %v1070
        %v1129 = vpack.c.b16 %v1128, %v1127
        %1131 = vmatprep.subr.bf16.mxu0 0
        %1132 = vmatpush1.bf16.msra.mxu0 %v1129
        %1133 = vmatprep.subr.bf16.mxu0 0
        %1134 = vmatpush1.bf16.msra.mxu0 0
        %1135 = vmatprep.subr.bf16.mxu0 0
        %1136 = vmatpush1.bf16.msra.mxu0 0
        %1137 = vmatprep.subr.bf16.mxu0 0
        %1138 = vmatpush1.bf16.msra.mxu0 0
        %1139 = vmatprep.subr.bf16.mxu0 0
        %1140 = vmatpush1.bf16.msra.mxu0 0
        %1141 = vmatprep.subr.bf16.mxu0 0
        %1142 = vmatpush1.bf16.msra.mxu0 0
        %1143 = vmatprep.subr.bf16.mxu0 0
        %1144 = vmatpush1.bf16.msra.mxu0 0
        %1145 = vmatprep.subr.bf16.mxu0 0
        %1146 = vmatpush1.bf16.msra.mxu0 0
        %1147 = vmatprep.subr.bf16.mxu0 0
        %1148 = vmatpush1.bf16.msra.mxu0 0
        %1149 = vmatprep.subr.bf16.mxu0 0
        %1150 = vmatpush1.bf16.msra.mxu0 0
        %1151 = vmatprep.subr.bf16.mxu0 0
        %1152 = vmatpush1.bf16.msra.mxu0 0
        %1153 = vmatprep.subr.bf16.mxu0 0
        %1154 = vmatpush1.bf16.msra.mxu0 0
        %1155 = vmatprep.subr.bf16.mxu0 0
        %1156 = vmatpush1.bf16.msra.mxu0 0
        %1157 = vmatprep.subr.bf16.mxu0 0
        %1158 = vmatpush1.bf16.msra.mxu0 0
        %1159 = vmatprep.subr.bf16.mxu0 0
        %1160 = vmatpush1.bf16.msra.mxu0 0
        %1161 = vmatprep.subr.bf16.mxu0 0
        %1162 = vmatpush1.bf16.msra.mxu0 0
        %1163 = vmatprep.mubr.bf16.mxu0 0
        %1164 = vmatmul.mubr.bf16.gmra.mrb[0].mxu0 %v1083
        %v1165 = vpop.f32.mrb[0].mxu0
        %v1166 = vadd.f32 0.0, %v1165
        %v1167 = vpop.f32.mrb[0].mxu0
        %v1168 = vpop.f32.mrb[0].mxu0
        %v1169 = vpop.f32.mrb[0].mxu0
        %1170 = vdwg.mxu0
        %v1173 = vunpack.c.l.b16 %v1071
        %v1174 = vunpack.c.l.b16 %v1072
        %v1175 = vpack.c.b16 %v1174, %v1173
        %1177 = vmatprep.subr.bf16.mxu0 0
        %1178 = vmatpush1.bf16.msra.mxu0 %v1175
        %1179 = vmatprep.subr.bf16.mxu0 0
        %1180 = vmatpush1.bf16.msra.mxu0 0
        %1181 = vmatprep.subr.bf16.mxu0 0
        %1182 = vmatpush1.bf16.msra.mxu0 0
        %1183 = vmatprep.subr.bf16.mxu0 0
        %1184 = vmatpush1.bf16.msra.mxu0 0
        %1185 = vmatprep.subr.bf16.mxu0 0
        %1186 = vmatpush1.bf16.msra.mxu0 0
        %1187 = vmatprep.subr.bf16.mxu0 0
        %1188 = vmatpush1.bf16.msra.mxu0 0
        %1189 = vmatprep.subr.bf16.mxu0 0
        %1190 = vmatpush1.bf16.msra.mxu0 0
        %1191 = vmatprep.subr.bf16.mxu0 0
        %1192 = vmatpush1.bf16.msra.mxu0 0
        %1193 = vmatprep.subr.bf16.mxu0 0
        %1194 = vmatpush1.bf16.msra.mxu0 0
        %1195 = vmatprep.subr.bf16.mxu0 0
        %1196 = vmatpush1.bf16.msra.mxu0 0
        %1197 = vmatprep.subr.bf16.mxu0 0
        %1198 = vmatpush1.bf16.msra.mxu0 0
        %1199 = vmatprep.subr.bf16.mxu0 0
        %1200 = vmatpush1.bf16.msra.mxu0 0
        %1201 = vmatprep.subr.bf16.mxu0 0
        %1202 = vmatpush1.bf16.msra.mxu0 0
        %1203 = vmatprep.subr.bf16.mxu0 0
        %1204 = vmatpush1.bf16.msra.mxu0 0
        %1205 = vmatprep.subr.bf16.mxu0 0
        %1206 = vmatpush1.bf16.msra.mxu0 0
        %1207 = vmatprep.subr.bf16.mxu0 0
        %1208 = vmatpush1.bf16.msra.mxu0 0
        %1209 = vmatprep.mubr.bf16.mxu0 0
        %1210 = vmatmul.mubr.bf16.gmra.mrb[0].mxu0 %v1083
        %v1211 = vpop.f32.mrb[0].mxu0
        %v1212 = vadd.f32 0.0, %v1211
        %v1213 = vpop.f32.mrb[0].mxu0
        %v1214 = vpop.f32.mrb[0].mxu0
        %v1215 = vpop.f32.mrb[0].mxu0
        %1216 = vdwg.mxu0
        %v1219 = vunpack.c.l.b16 %v1073
        %v1220 = vunpack.c.l.b16 %v1074
        %v1221 = vpack.c.b16 %v1220, %v1219
        %1223 = vmatprep.subr.bf16.mxu0 0
        %1224 = vmatpush1.bf16.msra.mxu0 %v1221
        %1225 = vmatprep.subr.bf16.mxu0 0
        %1226 = vmatpush1.bf16.msra.mxu0 0
        %1227 = vmatprep.subr.bf16.mxu0 0
        %1228 = vmatpush1.bf16.msra.mxu0 0
        %1229 = vmatprep.subr.bf16.mxu0 0
        %1230 = vmatpush1.bf16.msra.mxu0 0
        %1231 = vmatprep.subr.bf16.mxu0 0
        %1232 = vmatpush1.bf16.msra.mxu0 0
        %1233 = vmatprep.subr.bf16.mxu0 0
        %1234 = vmatpush1.bf16.msra.mxu0 0
        %1235 = vmatprep.subr.bf16.mxu0 0
        %1236 = vmatpush1.bf16.msra.mxu0 0
        %1237 = vmatprep.subr.bf16.mxu0 0
        %1238 = vmatpush1.bf16.msra.mxu0 0
        %1239 = vmatprep.subr.bf16.mxu0 0
        %1240 = vmatpush1.bf16.msra.mxu0 0
        %1241 = vmatprep.subr.bf16.mxu0 0
        %1242 = vmatpush1.bf16.msra.mxu0 0
        %1243 = vmatprep.subr.bf16.mxu0 0
        %1244 = vmatpush1.bf16.msra.mxu0 0
        %1245 = vmatprep.subr.bf16.mxu0 0
        %1246 = vmatpush1.bf16.msra.mxu0 0
        %1247 = vmatprep.subr.bf16.mxu0 0
        %1248 = vmatpush1.bf16.msra.mxu0 0
        %1249 = vmatprep.subr.bf16.mxu0 0
        %1250 = vmatpush1.bf16.msra.mxu0 0
        %1251 = vmatprep.subr.bf16.mxu0 0
        %1252 = vmatpush1.bf16.msra.mxu0 0
        %1253 = vmatprep.subr.bf16.mxu0 0
        %1254 = vmatpush1.bf16.msra.mxu0 0
        %1255 = vmatprep.mubr.bf16.mxu0 0
        %1256 = vmatmul.mubr.bf16.gmra.mrb[0].mxu0 %v1083
        %v1257 = vpop.f32.mrb[0].mxu0
        %v1258 = vadd.f32 0.0, %v1257
        %v1259 = vpop.f32.mrb[0].mxu0
        %v1260 = vpop.f32.mrb[0].mxu0
        %v1261 = vpop.f32.mrb[0].mxu0
        %1262 = vdwg.mxu0
        %v1263 = vadd.f32 %v376, %v1120
        %v1264 = vadd.f32 %v428, %v1166
        %v1265 = vadd.f32 %v480, %v1212
        %v1266 = vadd.f32 %v532, %v1258
        %v1267 = vld [vmem:[%s6] sm:$0xf]
        %v1268 = vld [vmem:[%s6 + $0x4] sm:$0xf]
        %v1269 = vld [vmem:[%s6 + $0x8] sm:$0xf]
        %v1270 = vld [vmem:[%s6 + $0xc] sm:$0xf]
        %v1271 = vld [vmem:[%s6 + $0x10] sm:$0xf]
        %v1272 = vld [vmem:[%s6 + $0x14] sm:$0xf]
        %v1273 = vld [vmem:[%s6 + $0x18] sm:$0xf]
        %v1274 = vld [vmem:[%s6 + $0x1c] sm:$0xf]
        %v1277 = vunpack.c.l.b16 %v1267
        %v1278 = vunpack.c.l.b16 %v1268
        %v1279 = vpack.c.b16 %v1278, %v1277
        %v1282 = vsel %vm1081, %v1066, 0
        %1284 = vmatprep.subr.bf16.mxu0 0
        %1285 = vmatpush1.bf16.msra.mxu0 %v1279
        %1286 = vmatprep.subr.bf16.mxu0 0
        %1287 = vmatpush1.bf16.msra.mxu0 0
        %1288 = vmatprep.subr.bf16.mxu0 0
        %1289 = vmatpush1.bf16.msra.mxu0 0
        %1290 = vmatprep.subr.bf16.mxu0 0
        %1291 = vmatpush1.bf16.msra.mxu0 0
        %1292 = vmatprep.subr.bf16.mxu0 0
        %1293 = vmatpush1.bf16.msra.mxu0 0
        %1294 = vmatprep.subr.bf16.mxu0 0
        %1295 = vmatpush1.bf16.msra.mxu0 0
        %1296 = vmatprep.subr.bf16.mxu0 0
        %1297 = vmatpush1.bf16.msra.mxu0 0
        %1298 = vmatprep.subr.bf16.mxu0 0
        %1299 = vmatpush1.bf16.msra.mxu0 0
        %1300 = vmatprep.subr.bf16.mxu0 0
        %1301 = vmatpush1.bf16.msra.mxu0 0
        %1302 = vmatprep.subr.bf16.mxu0 0
        %1303 = vmatpush1.bf16.msra.mxu0 0
        %1304 = vmatprep.subr.bf16.mxu0 0
        %1305 = vmatpush1.bf16.msra.mxu0 0
        %1306 = vmatprep.subr.bf16.mxu0 0
        %1307 = vmatpush1.bf16.msra.mxu0 0
        %1308 = vmatprep.subr.bf16.mxu0 0
        %1309 = vmatpush1.bf16.msra.mxu0 0
        %1310 = vmatprep.subr.bf16.mxu0 0
        %1311 = vmatpush1.bf16.msra.mxu0 0
        %1312 = vmatprep.subr.bf16.mxu0 0
        %1313 = vmatpush1.bf16.msra.mxu0 0
        %1314 = vmatprep.subr.bf16.mxu0 0
        %1315 = vmatpush1.bf16.msra.mxu0 0
        %1316 = vmatprep.mubr.bf16.mxu0 0
        %1317 = vmatmul.mubr.bf16.gmra.mrb[0].mxu0 %v1282
        %v1318 = vpop.f32.mrb[0].mxu0
        %v1319 = vadd.f32 0.0, %v1318
        %v1320 = vpop.f32.mrb[0].mxu0
        %v1321 = vpop.f32.mrb[0].mxu0
        %v1322 = vpop.f32.mrb[0].mxu0
        %1323 = vdwg.mxu0
        %v1326 = vunpack.c.l.b16 %v1269
        %v1327 = vunpack.c.l.b16 %v1270
        %v1328 = vpack.c.b16 %v1327, %v1326
        %1330 = vmatprep.subr.bf16.mxu0 0
        %1331 = vmatpush1.bf16.msra.mxu0 %v1328
        %1332 = vmatprep.subr.bf16.mxu0 0
        %1333 = vmatpush1.bf16.msra.mxu0 0
        %1334 = vmatprep.subr.bf16.mxu0 0
        %1335 = vmatpush1.bf16.msra.mxu0 0
        %1336 = vmatprep.subr.bf16.mxu0 0
        %1337 = vmatpush1.bf16.msra.mxu0 0
        %1338 = vmatprep.subr.bf16.mxu0 0
        %1339 = vmatpush1.bf16.msra.mxu0 0
        %1340 = vmatprep.subr.bf16.mxu0 0
        %1341 = vmatpush1.bf16.msra.mxu0 0
        %1342 = vmatprep.subr.bf16.mxu0 0
        %1343 = vmatpush1.bf16.msra.mxu0 0
        %1344 = vmatprep.subr.bf16.mxu0 0
        %1345 = vmatpush1.bf16.msra.mxu0 0
        %1346 = vmatprep.subr.bf16.mxu0 0
        %1347 = vmatpush1.bf16.msra.mxu0 0
        %1348 = vmatprep.subr.bf16.mxu0 0
        %1349 = vmatpush1.bf16.msra.mxu0 0
        %1350 = vmatprep.subr.bf16.mxu0 0
        %1351 = vmatpush1.bf16.msra.mxu0 0
        %1352 = vmatprep.subr.bf16.mxu0 0
        %1353 = vmatpush1.bf16.msra.mxu0 0
        %1354 = vmatprep.subr.bf16.mxu0 0
        %1355 = vmatpush1.bf16.msra.mxu0 0
        %1356 = vmatprep.subr.bf16.mxu0 0
        %1357 = vmatpush1.bf16.msra.mxu0 0
        %1358 = vmatprep.subr.bf16.mxu0 0
        %1359 = vmatpush1.bf16.msra.mxu0 0
        %1360 = vmatprep.subr.bf16.mxu0 0
        %1361 = vmatpush1.bf16.msra.mxu0 0
        %1362 = vmatprep.mubr.bf16.mxu0 0
        %1363 = vmatmul.mubr.bf16.gmra.mrb[0].mxu0 %v1282
        %v1364 = vpop.f32.mrb[0].mxu0
        %v1365 = vadd.f32 0.0, %v1364
        %v1366 = vpop.f32.mrb[0].mxu0
        %v1367 = vpop.f32.mrb[0].mxu0
        %v1368 = vpop.f32.mrb[0].mxu0
        %1369 = vdwg.mxu0
        %v1372 = vunpack.c.l.b16 %v1271
        %v1373 = vunpack.c.l.b16 %v1272
        %v1374 = vpack.c.b16 %v1373, %v1372
        %1376 = vmatprep.subr.bf16.mxu0 0
        %1377 = vmatpush1.bf16.msra.mxu0 %v1374
        %1378 = vmatprep.subr.bf16.mxu0 0
        %1379 = vmatpush1.bf16.msra.mxu0 0
        %1380 = vmatprep.subr.bf16.mxu0 0
        %1381 = vmatpush1.bf16.msra.mxu0 0
        %1382 = vmatprep.subr.bf16.mxu0 0
        %1383 = vmatpush1.bf16.msra.mxu0 0
        %1384 = vmatprep.subr.bf16.mxu0 0
        %1385 = vmatpush1.bf16.msra.mxu0 0
        %1386 = vmatprep.subr.bf16.mxu0 0
        %1387 = vmatpush1.bf16.msra.mxu0 0
        %1388 = vmatprep.subr.bf16.mxu0 0
        %1389 = vmatpush1.bf16.msra.mxu0 0
        %1390 = vmatprep.subr.bf16.mxu0 0
        %1391 = vmatpush1.bf16.msra.mxu0 0
        %1392 = vmatprep.subr.bf16.mxu0 0
        %1393 = vmatpush1.bf16.msra.mxu0 0
        %1394 = vmatprep.subr.bf16.mxu0 0
        %1395 = vmatpush1.bf16.msra.mxu0 0
        %1396 = vmatprep.subr.bf16.mxu0 0
        %1397 = vmatpush1.bf16.msra.mxu0 0
        %1398 = vmatprep.subr.bf16.mxu0 0
        %1399 = vmatpush1.bf16.msra.mxu0 0
        %1400 = vmatprep.subr.bf16.mxu0 0
        %1401 = vmatpush1.bf16.msra.mxu0 0
        %1402 = vmatprep.subr.bf16.mxu0 0
        %1403 = vmatpush1.bf16.msra.mxu0 0
        %1404 = vmatprep.subr.bf16.mxu0 0
        %1405 = vmatpush1.bf16.msra.mxu0 0
        %1406 = vmatprep.subr.bf16.mxu0 0
        %1407 = vmatpush1.bf16.msra.mxu0 0
        %1408 = vmatprep.mubr.bf16.mxu0 0
        %1409 = vmatmul.mubr.bf16.gmra.mrb[0].mxu0 %v1282
        %v1410 = vpop.f32.mrb[0].mxu0
        %v1411 = vadd.f32 0.0, %v1410
        %v1412 = vpop.f32.mrb[0].mxu0
        %v1413 = vpop.f32.mrb[0].mxu0
        %v1414 = vpop.f32.mrb[0].mxu0
        %1415 = vdwg.mxu0
        %v1418 = vunpack.c.l.b16 %v1273
        %v1419 = vunpack.c.l.b16 %v1274
        %v1420 = vpack.c.b16 %v1419, %v1418
        %1422 = vmatprep.subr.bf16.mxu0 0
        %1423 = vmatpush1.bf16.msra.mxu0 %v1420
        %1424 = vmatprep.subr.bf16.mxu0 0
        %1425 = vmatpush1.bf16.msra.mxu0 0
        %1426 = vmatprep.subr.bf16.mxu0 0
        %1427 = vmatpush1.bf16.msra.mxu0 0
        %1428 = vmatprep.subr.bf16.mxu0 0
        %1429 = vmatpush1.bf16.msra.mxu0 0
        %1430 = vmatprep.subr.bf16.mxu0 0
        %1431 = vmatpush1.bf16.msra.mxu0 0
        %1432 = vmatprep.subr.bf16.mxu0 0
        %1433 = vmatpush1.bf16.msra.mxu0 0
        %1434 = vmatprep.subr.bf16.mxu0 0
        %1435 = vmatpush1.bf16.msra.mxu0 0
        %1436 = vmatprep.subr.bf16.mxu0 0
        %1437 = vmatpush1.bf16.msra.mxu0 0
        %1438 = vmatprep.subr.bf16.mxu0 0
        %1439 = vmatpush1.bf16.msra.mxu0 0
        %1440 = vmatprep.subr.bf16.mxu0 0
        %1441 = vmatpush1.bf16.msra.mxu0 0
        %1442 = vmatprep.subr.bf16.mxu0 0
        %1443 = vmatpush1.bf16.msra.mxu0 0
        %1444 = vmatprep.subr.bf16.mxu0 0
        %1445 = vmatpush1.bf16.msra.mxu0 0
        %1446 = vmatprep.subr.bf16.mxu0 0
        %1447 = vmatpush1.bf16.msra.mxu0 0
        %1448 = vmatprep.subr.bf16.mxu0 0
        %1449 = vmatpush1.bf16.msra.mxu0 0
        %1450 = vmatprep.subr.bf16.mxu0 0
        %1451 = vmatpush1.bf16.msra.mxu0 0
        %1452 = vmatprep.subr.bf16.mxu0 0
        %1453 = vmatpush1.bf16.msra.mxu0 0
        %1454 = vmatprep.mubr.bf16.mxu0 0
        %1455 = vmatmul.mubr.bf16.gmra.mrb[0].mxu0 %v1282
        %v1456 = vpop.f32.mrb[0].mxu0
        %v1457 = vadd.f32 0.0, %v1456
        %v1458 = vpop.f32.mrb[0].mxu0
        %v1459 = vpop.f32.mrb[0].mxu0
        %v1460 = vpop.f32.mrb[0].mxu0
        %1461 = vdwg.mxu0
        %v1462 = vadd.f32 %v792, %v1319
        %v1463 = vadd.f32 %v844, %v1365
        %v1464 = vadd.f32 %v896, %v1411
        %v1465 = vadd.f32 %v948, %v1457
        %v1466 = vpack.c.bf16 %v1263, %v1263
        %v1467 = vpack.c.bf16 %v1264, %v1264
        %v1468 = vpack.c.bf16 %v1265, %v1265
        %v1469 = vpack.c.bf16 %v1266, %v1266
        %v1470 = vpack.c.bf16 %v584, %v584
        %v1471 = vpack.c.bf16 %v636, %v636
        %v1472 = vpack.c.bf16 %v688, %v688
        %v1473 = vpack.c.bf16 %v740, %v740
        %vm1474 = vcmask 64512
        %v1476 = vsel %vm1474, %v1466, 0
        %v1479 = vsel %vm1474, %v1470, 0
        %1481 = vmatprep.subr.bf16.mxu0 0
        %1482 = vmatpush1.bf16.xpose.msra.mxu0 %v1479
        %1483 = vmatprep.subr.bf16.mxu0 0
        %1484 = vmatpush1.bf16.xpose.msra.mxu0 0
        %1485 = vmatprep.subr.bf16.mxu0 0
        %1486 = vmatpush1.bf16.xpose.msra.mxu0 0
        %1487 = vmatprep.subr.bf16.mxu0 0
        %1488 = vmatpush1.bf16.xpose.msra.mxu0 0
        %1489 = vmatprep.subr.bf16.mxu0 0
        %1490 = vmatpush1.bf16.xpose.msra.mxu0 0
        %1491 = vmatprep.subr.bf16.mxu0 0
        %1492 = vmatpush1.bf16.xpose.msra.mxu0 0
        %1493 = vmatprep.subr.bf16.mxu0 0
        %1494 = vmatpush1.bf16.xpose.msra.mxu0 0
        %1495 = vmatprep.subr.bf16.mxu0 0
        %1496 = vmatpush1.bf16.xpose.msra.mxu0 0
        %1497 = vmatprep.subr.bf16.mxu0 0
        %1498 = vmatpush1.bf16.xpose.msra.mxu0 0
        %1499 = vmatprep.subr.bf16.mxu0 0
        %1500 = vmatpush1.bf16.xpose.msra.mxu0 0
        %1501 = vmatprep.subr.bf16.mxu0 0
        %1502 = vmatpush1.bf16.xpose.msra.mxu0 0
        %1503 = vmatprep.subr.bf16.mxu0 0
        %1504 = vmatpush1.bf16.xpose.msra.mxu0 0
        %1505 = vmatprep.subr.bf16.mxu0 0
        %1506 = vmatpush1.bf16.xpose.msra.mxu0 0
        %1507 = vmatprep.subr.bf16.mxu0 0
        %1508 = vmatpush1.bf16.xpose.msra.mxu0 0
        %1509 = vmatprep.subr.bf16.mxu0 0
        %1510 = vmatpush1.bf16.xpose.msra.mxu0 0
        %1511 = vmatprep.subr.bf16.mxu0 0
        %1512 = vmatpush1.bf16.xpose.msra.mxu0 0
        %1513 = vmatprep.mubr.bf16.mxu0 0
        %1514 = vmatmul.mubr.bf16.gmra.mrb[0].mxu0 %v1476
        %v1515 = vpop.f32.mrb[0].mxu0
        %v1516 = vadd.f32 0.0, %v1515
        %v1517 = vpop.f32.mrb[0].mxu0
        %v1518 = vpop.f32.mrb[0].mxu0
        %v1519 = vpop.f32.mrb[0].mxu0
        %1520 = vdwg.mxu0
        %v1522 = vsel %vm1474, %v1467, 0
        %v1525 = vsel %vm1474, %v1471, 0
        %1527 = vmatprep.subr.bf16.mxu0 0
        %1528 = vmatpush1.bf16.xpose.msra.mxu0 %v1525
        %1529 = vmatprep.subr.bf16.mxu0 0
        %1530 = vmatpush1.bf16.xpose.msra.mxu0 0
        %1531 = vmatprep.subr.bf16.mxu0 0
        %1532 = vmatpush1.bf16.xpose.msra.mxu0 0
        %1533 = vmatprep.subr.bf16.mxu0 0
        %1534 = vmatpush1.bf16.xpose.msra.mxu0 0
        %1535 = vmatprep.subr.bf16.mxu0 0
        %1536 = vmatpush1.bf16.xpose.msra.mxu0 0
        %1537 = vmatprep.subr.bf16.mxu0 0
        %1538 = vmatpush1.bf16.xpose.msra.mxu0 0
        %1539 = vmatprep.subr.bf16.mxu0 0
        %1540 = vmatpush1.bf16.xpose.msra.mxu0 0
        %1541 = vmatprep.subr.bf16.mxu0 0
        %1542 = vmatpush1.bf16.xpose.msra.mxu0 0
        %1543 = vmatprep.subr.bf16.mxu0 0
        %1544 = vmatpush1.bf16.xpose.msra.mxu0 0
        %1545 = vmatprep.subr.bf16.mxu0 0
        %1546 = vmatpush1.bf16.xpose.msra.mxu0 0
        %1547 = vmatprep.subr.bf16.mxu0 0
        %1548 = vmatpush1.bf16.xpose.msra.mxu0 0
        %1549 = vmatprep.subr.bf16.mxu0 0
        %1550 = vmatpush1.bf16.xpose.msra.mxu0 0
        %1551 = vmatprep.subr.bf16.mxu0 0
        %1552 = vmatpush1.bf16.xpose.msra.mxu0 0
        %1553 = vmatprep.subr.bf16.mxu0 0
        %1554 = vmatpush1.bf16.xpose.msra.mxu0 0
        %1555 = vmatprep.subr.bf16.mxu0 0
        %1556 = vmatpush1.bf16.xpose.msra.mxu0 0
        %1557 = vmatprep.subr.bf16.mxu0 0
        %1558 = vmatpush1.bf16.xpose.msra.mxu0 0
        %1559 = vmatprep.mubr.bf16.mxu0 0
        %1560 = vmatmul.mubr.bf16.gmra.mrb[0].mxu0 %v1522
        %v1561 = vpop.f32.mrb[0].mxu0
        %v1562 = vadd.f32 0.0, %v1561
        %v1563 = vpop.f32.mrb[0].mxu0
        %v1564 = vpop.f32.mrb[0].mxu0
        %v1565 = vpop.f32.mrb[0].mxu0
        %1566 = vdwg.mxu0
        %v1568 = vsel %vm1474, %v1468, 0
        %v1571 = vsel %vm1474, %v1472, 0
        %1573 = vmatprep.subr.bf16.mxu0 0
        %1574 = vmatpush1.bf16.xpose.msra.mxu0 %v1571
        %1575 = vmatprep.subr.bf16.mxu0 0
        %1576 = vmatpush1.bf16.xpose.msra.mxu0 0
        %1577 = vmatprep.subr.bf16.mxu0 0
        %1578 = vmatpush1.bf16.xpose.msra.mxu0 0
        %1579 = vmatprep.subr.bf16.mxu0 0
        %1580 = vmatpush1.bf16.xpose.msra.mxu0 0
        %1581 = vmatprep.subr.bf16.mxu0 0
        %1582 = vmatpush1.bf16.xpose.msra.mxu0 0
        %1583 = vmatprep.subr.bf16.mxu0 0
        %1584 = vmatpush1.bf16.xpose.msra.mxu0 0
        %1585 = vmatprep.subr.bf16.mxu0 0
        %1586 = vmatpush1.bf16.xpose.msra.mxu0 0
        %1587 = vmatprep.subr.bf16.mxu0 0
        %1588 = vmatpush1.bf16.xpose.msra.mxu0 0
        %1589 = vmatprep.subr.bf16.mxu0 0
        %1590 = vmatpush1.bf16.xpose.msra.mxu0 0
        %1591 = vmatprep.subr.bf16.mxu0 0
        %1592 = vmatpush1.bf16.xpose.msra.mxu0 0
        %1593 = vmatprep.subr.bf16.mxu0 0
        %1594 = vmatpush1.bf16.xpose.msra.mxu0 0
        %1595 = vmatprep.subr.bf16.mxu0 0
        %1596 = vmatpush1.bf16.xpose.msra.mxu0 0
        %1597 = vmatprep.subr.bf16.mxu0 0
        %1598 = vmatpush1.bf16.xpose.msra.mxu0 0
        %1599 = vmatprep.subr.bf16.mxu0 0
        %1600 = vmatpush1.bf16.xpose.msra.mxu0 0
        %1601 = vmatprep.subr.bf16.mxu0 0
        %1602 = vmatpush1.bf16.xpose.msra.mxu0 0
        %1603 = vmatprep.subr.bf16.mxu0 0
        %1604 = vmatpush1.bf16.xpose.msra.mxu0 0
        %1605 = vmatprep.mubr.bf16.mxu0 0
        %1606 = vmatmul.mubr.bf16.gmra.mrb[0].mxu0 %v1568
        %v1607 = vpop.f32.mrb[0].mxu0
        %v1608 = vadd.f32 0.0, %v1607
        %v1609 = vpop.f32.mrb[0].mxu0
        %v1610 = vpop.f32.mrb[0].mxu0
        %v1611 = vpop.f32.mrb[0].mxu0
        %1612 = vdwg.mxu0
        %v1614 = vsel %vm1474, %v1469, 0
        %v1617 = vsel %vm1474, %v1473, 0
        %1619 = vmatprep.subr.bf16.mxu0 0
        %1620 = vmatpush1.bf16.xpose.msra.mxu0 %v1617
        %1621 = vmatprep.subr.bf16.mxu0 0
        %1622 = vmatpush1.bf16.xpose.msra.mxu0 0
        %1623 = vmatprep.subr.bf16.mxu0 0
        %1624 = vmatpush1.bf16.xpose.msra.mxu0 0
        %1625 = vmatprep.subr.bf16.mxu0 0
        %1626 = vmatpush1.bf16.xpose.msra.mxu0 0
        %1627 = vmatprep.subr.bf16.mxu0 0
        %1628 = vmatpush1.bf16.xpose.msra.mxu0 0
        %1629 = vmatprep.subr.bf16.mxu0 0
        %1630 = vmatpush1.bf16.xpose.msra.mxu0 0
        %1631 = vmatprep.subr.bf16.mxu0 0
        %1632 = vmatpush1.bf16.xpose.msra.mxu0 0
        %1633 = vmatprep.subr.bf16.mxu0 0
        %1634 = vmatpush1.bf16.xpose.msra.mxu0 0
        %1635 = vmatprep.subr.bf16.mxu0 0
        %1636 = vmatpush1.bf16.xpose.msra.mxu0 0
        %1637 = vmatprep.subr.bf16.mxu0 0
        %1638 = vmatpush1.bf16.xpose.msra.mxu0 0
        %1639 = vmatprep.subr.bf16.mxu0 0
        %1640 = vmatpush1.bf16.xpose.msra.mxu0 0
        %1641 = vmatprep.subr.bf16.mxu0 0
        %1642 = vmatpush1.bf16.xpose.msra.mxu0 0
        %1643 = vmatprep.subr.bf16.mxu0 0
        %1644 = vmatpush1.bf16.xpose.msra.mxu0 0
        %1645 = vmatprep.subr.bf16.mxu0 0
        %1646 = vmatpush1.bf16.xpose.msra.mxu0 0
        %1647 = vmatprep.subr.bf16.mxu0 0
        %1648 = vmatpush1.bf16.xpose.msra.mxu0 0
        %1649 = vmatprep.subr.bf16.mxu0 0
        %1650 = vmatpush1.bf16.xpose.msra.mxu0 0
        %1651 = vmatprep.mubr.bf16.mxu0 0
        %1652 = vmatmul.mubr.bf16.gmra.mrb[0].mxu0 %v1614
        %v1653 = vpop.f32.mrb[0].mxu0
        %v1654 = vadd.f32 0.0, %v1653
        %v1655 = vpop.f32.mrb[0].mxu0
        %v1656 = vpop.f32.mrb[0].mxu0
        %v1657 = vpop.f32.mrb[0].mxu0
        %1658 = vdwg.mxu0
        %v1659 = vsel %vm1474, %v1516, -inf
        %1660 = vmax.xlane.f32.xlu0 %v1659
        %v1661 = vpop.xlane.xlu0 %1660
        %v1662 = vsel %vm1474, %v1562, -inf
        %1663 = vmax.xlane.f32.xlu0 %v1662
        %v1664 = vpop.xlane.xlu0 %1663
        %v1665 = vsel %vm1474, %v1608, -inf
        %1666 = vmax.xlane.f32.xlu0 %v1665
        %v1667 = vpop.xlane.xlu0 %1666
        %v1668 = vsel %vm1474, %v1654, -inf
        %1669 = vmax.xlane.f32.xlu0 %v1668
        %v1670 = vpop.xlane.xlu0 %1669
        %v1671 = vsub.f32 %v1516, %v1661
        %v1672 = vsub.f32 %v1562, %v1664
        %v1673 = vsub.f32 %v1608, %v1667
        %v1674 = vsub.f32 %v1654, %v1670
        %v1675 = vmul.f32 %v1671, 1.442695
        %v1676 = vpow.pop %v1675
        %v1677 = vmul.f32 %v1672, 1.442695
        %v1678 = vpow.pop %v1677
        %v1679 = vmul.f32 %v1673, 1.442695
        %v1680 = vpow.pop %v1679
        %v1681 = vmul.f32 %v1674, 1.442695
        %v1682 = vpow.pop %v1681
        %v1683 = vsel %vm1474, %v1676, 0.0
        %1684 = vadd.xlane.f32.xlu0 %v1683
        %v1685 = vpop.xlane.xlu0 %1684
        %v1686 = vsel %vm1474, %v1678, 0.0
        %1687 = vadd.xlane.f32.xlu0 %v1686
        %v1688 = vpop.xlane.xlu0 %1687
        %v1689 = vsel %vm1474, %v1680, 0.0
        %1690 = vadd.xlane.f32.xlu0 %v1689
        %v1691 = vpop.xlane.xlu0 %1690
        %v1692 = vsel %vm1474, %v1682, 0.0
        %1693 = vadd.xlane.f32.xlu0 %v1692
        %v1694 = vpop.xlane.xlu0 %1693
        %v1695 = vrcp.pop %v1685
        %v1696 = vrcp.pop %v1688
        %v1697 = vrcp.pop %v1691
        %v1698 = vrcp.pop %v1694
        %v1699 = vmul.f32 %v1676, %v1695
        %v1700 = vmul.f32 %v1678, %v1696
        %v1701 = vmul.f32 %v1680, %v1697
        %v1702 = vmul.f32 %v1682, %v1698
        %v1703 = vpack.c.bf16 %v1699, %v1699
        %v1704 = vpack.c.bf16 %v1700, %v1700
        %v1705 = vpack.c.bf16 %v1701, %v1701
        %v1706 = vpack.c.bf16 %v1702, %v1702
        %v1707 = vpack.c.bf16 %v1462, %v1462
        %v1708 = vpack.c.bf16 %v1463, %v1463
        %v1709 = vpack.c.bf16 %v1464, %v1464
        %v1710 = vpack.c.bf16 %v1465, %v1465
        %v1712 = vsel %vm1474, %v1703, 0
        %vm1714 = vcmask 1043456
        %v1716 = vsel %vm1714, %v1707, 0
        %1718 = vmatprep.subr.bf16.mxu0 0
        %1719 = vmatpush1.bf16.msra.mxu0 %v1716
        %1720 = vmatprep.subr.bf16.mxu0 0
        %1721 = vmatpush1.bf16.msra.mxu0 0
        %1722 = vmatprep.subr.bf16.mxu0 0
        %1723 = vmatpush1.bf16.msra.mxu0 0
        %1724 = vmatprep.subr.bf16.mxu0 0
        %1725 = vmatpush1.bf16.msra.mxu0 0
        %1726 = vmatprep.subr.bf16.mxu0 0
        %1727 = vmatpush1.bf16.msra.mxu0 0
        %1728 = vmatprep.subr.bf16.mxu0 0
        %1729 = vmatpush1.bf16.msra.mxu0 0
        %1730 = vmatprep.subr.bf16.mxu0 0
        %1731 = vmatpush1.bf16.msra.mxu0 0
        %1732 = vmatprep.subr.bf16.mxu0 0
        %1733 = vmatpush1.bf16.msra.mxu0 0
        %1734 = vmatprep.subr.bf16.mxu0 0
        %1735 = vmatpush1.bf16.msra.mxu0 0
        %1736 = vmatprep.subr.bf16.mxu0 0
        %1737 = vmatpush1.bf16.msra.mxu0 0
        %1738 = vmatprep.subr.bf16.mxu0 0
        %1739 = vmatpush1.bf16.msra.mxu0 0
        %1740 = vmatprep.subr.bf16.mxu0 0
        %1741 = vmatpush1.bf16.msra.mxu0 0
        %1742 = vmatprep.subr.bf16.mxu0 0
        %1743 = vmatpush1.bf16.msra.mxu0 0
        %1744 = vmatprep.subr.bf16.mxu0 0
        %1745 = vmatpush1.bf16.msra.mxu0 0
        %1746 = vmatprep.subr.bf16.mxu0 0
        %1747 = vmatpush1.bf16.msra.mxu0 0
        %1748 = vmatprep.subr.bf16.mxu0 0
        %1749 = vmatpush1.bf16.msra.mxu0 0
        %1750 = vmatprep.mubr.bf16.mxu0 0
        %1751 = vmatmul.mubr.bf16.gmra.mrb[0].mxu0 %v1712
        %v1752 = vpop.f32.mrb[0].mxu0
        %v1753 = vadd.f32 0.0, %v1752
        %v1754 = vpop.f32.mrb[0].mxu0
        %v1755 = vpop.f32.mrb[0].mxu0
        %v1756 = vpop.f32.mrb[0].mxu0
        %1757 = vdwg.mxu0
        %v1759 = vsel %vm1474, %v1704, 0
        %v1762 = vsel %vm1714, %v1708, 0
        %1764 = vmatprep.subr.bf16.mxu0 0
        %1765 = vmatpush1.bf16.msra.mxu0 %v1762
        %1766 = vmatprep.subr.bf16.mxu0 0
        %1767 = vmatpush1.bf16.msra.mxu0 0
        %1768 = vmatprep.subr.bf16.mxu0 0
        %1769 = vmatpush1.bf16.msra.mxu0 0
        %1770 = vmatprep.subr.bf16.mxu0 0
        %1771 = vmatpush1.bf16.msra.mxu0 0
        %1772 = vmatprep.subr.bf16.mxu0 0
        %1773 = vmatpush1.bf16.msra.mxu0 0
        %1774 = vmatprep.subr.bf16.mxu0 0
        %1775 = vmatpush1.bf16.msra.mxu0 0
        %1776 = vmatprep.subr.bf16.mxu0 0
        %1777 = vmatpush1.bf16.msra.mxu0 0
        %1778 = vmatprep.subr.bf16.mxu0 0
        %1779 = vmatpush1.bf16.msra.mxu0 0
        %1780 = vmatprep.subr.bf16.mxu0 0
        %1781 = vmatpush1.bf16.msra.mxu0 0
        %1782 = vmatprep.subr.bf16.mxu0 0
        %1783 = vmatpush1.bf16.msra.mxu0 0
        %1784 = vmatprep.subr.bf16.mxu0 0
        %1785 = vmatpush1.bf16.msra.mxu0 0
        %1786 = vmatprep.subr.bf16.mxu0 0
        %1787 = vmatpush1.bf16.msra.mxu0 0
        %1788 = vmatprep.subr.bf16.mxu0 0
        %1789 = vmatpush1.bf16.msra.mxu0 0
        %1790 = vmatprep.subr.bf16.mxu0 0
        %1791 = vmatpush1.bf16.msra.mxu0 0
        %1792 = vmatprep.subr.bf16.mxu0 0
        %1793 = vmatpush1.bf16.msra.mxu0 0
        %1794 = vmatprep.subr.bf16.mxu0 0
        %1795 = vmatpush1.bf16.msra.mxu0 0
        %1796 = vmatprep.mubr.bf16.mxu0 0
        %1797 = vmatmul.mubr.bf16.gmra.mrb[0].mxu0 %v1759
        %v1798 = vpop.f32.mrb[0].mxu0
        %v1799 = vadd.f32 0.0, %v1798
        %v1800 = vpop.f32.mrb[0].mxu0
        %v1801 = vpop.f32.mrb[0].mxu0
        %v1802 = vpop.f32.mrb[0].mxu0
        %1803 = vdwg.mxu0
        %v1805 = vsel %vm1474, %v1705, 0
        %v1808 = vsel %vm1714, %v1709, 0
        %1810 = vmatprep.subr.bf16.mxu0 0
        %1811 = vmatpush1.bf16.msra.mxu0 %v1808
        %1812 = vmatprep.subr.bf16.mxu0 0
        %1813 = vmatpush1.bf16.msra.mxu0 0
        %1814 = vmatprep.subr.bf16.mxu0 0
        %1815 = vmatpush1.bf16.msra.mxu0 0
        %1816 = vmatprep.subr.bf16.mxu0 0
        %1817 = vmatpush1.bf16.msra.mxu0 0
        %1818 = vmatprep.subr.bf16.mxu0 0
        %1819 = vmatpush1.bf16.msra.mxu0 0
        %1820 = vmatprep.subr.bf16.mxu0 0
        %1821 = vmatpush1.bf16.msra.mxu0 0
        %1822 = vmatprep.subr.bf16.mxu0 0
        %1823 = vmatpush1.bf16.msra.mxu0 0
        %1824 = vmatprep.subr.bf16.mxu0 0
        %1825 = vmatpush1.bf16.msra.mxu0 0
        %1826 = vmatprep.subr.bf16.mxu0 0
        %1827 = vmatpush1.bf16.msra.mxu0 0
        %1828 = vmatprep.subr.bf16.mxu0 0
        %1829 = vmatpush1.bf16.msra.mxu0 0
        %1830 = vmatprep.subr.bf16.mxu0 0
        %1831 = vmatpush1.bf16.msra.mxu0 0
        %1832 = vmatprep.subr.bf16.mxu0 0
        %1833 = vmatpush1.bf16.msra.mxu0 0
        %1834 = vmatprep.subr.bf16.mxu0 0
        %1835 = vmatpush1.bf16.msra.mxu0 0
        %1836 = vmatprep.subr.bf16.mxu0 0
        %1837 = vmatpush1.bf16.msra.mxu0 0
        %1838 = vmatprep.subr.bf16.mxu0 0
        %1839 = vmatpush1.bf16.msra.mxu0 0
        %1840 = vmatprep.subr.bf16.mxu0 0
        %1841 = vmatpush1.bf16.msra.mxu0 0
        %1842 = vmatprep.mubr.bf16.mxu0 0
        %1843 = vmatmul.mubr.bf16.gmra.mrb[0].mxu0 %v1805
        %v1844 = vpop.f32.mrb[0].mxu0
        %v1845 = vadd.f32 0.0, %v1844
        %v1846 = vpop.f32.mrb[0].mxu0
        %v1847 = vpop.f32.mrb[0].mxu0
        %v1848 = vpop.f32.mrb[0].mxu0
        %1849 = vdwg.mxu0
        %v1851 = vsel %vm1474, %v1706, 0
        %v1854 = vsel %vm1714, %v1710, 0
        %1856 = vmatprep.subr.bf16.mxu0 0
        %1857 = vmatpush1.bf16.msra.mxu0 %v1854
        %1858 = vmatprep.subr.bf16.mxu0 0
        %1859 = vmatpush1.bf16.msra.mxu0 0
        %1860 = vmatprep.subr.bf16.mxu0 0
        %1861 = vmatpush1.bf16.msra.mxu0 0
        %1862 = vmatprep.subr.bf16.mxu0 0
        %1863 = vmatpush1.bf16.msra.mxu0 0
        %1864 = vmatprep.subr.bf16.mxu0 0
        %1865 = vmatpush1.bf16.msra.mxu0 0
        %1866 = vmatprep.subr.bf16.mxu0 0
        %1867 = vmatpush1.bf16.msra.mxu0 0
        %1868 = vmatprep.subr.bf16.mxu0 0
        %1869 = vmatpush1.bf16.msra.mxu0 0
        %1870 = vmatprep.subr.bf16.mxu0 0
        %1871 = vmatpush1.bf16.msra.mxu0 0
        %1872 = vmatprep.subr.bf16.mxu0 0
        %1873 = vmatpush1.bf16.msra.mxu0 0
        %1874 = vmatprep.subr.bf16.mxu0 0
        %1875 = vmatpush1.bf16.msra.mxu0 0
        %1876 = vmatprep.subr.bf16.mxu0 0
        %1877 = vmatpush1.bf16.msra.mxu0 0
        %1878 = vmatprep.subr.bf16.mxu0 0
        %1879 = vmatpush1.bf16.msra.mxu0 0
        %1880 = vmatprep.subr.bf16.mxu0 0
        %1881 = vmatpush1.bf16.msra.mxu0 0
        %1882 = vmatprep.subr.bf16.mxu0 0
        %1883 = vmatpush1.bf16.msra.mxu0 0
        %1884 = vmatprep.subr.bf16.mxu0 0
        %1885 = vmatpush1.bf16.msra.mxu0 0
        %1886 = vmatprep.subr.bf16.mxu0 0
        %1887 = vmatpush1.bf16.msra.mxu0 0
        %1888 = vmatprep.mubr.bf16.mxu0 0
        %1889 = vmatmul.mubr.bf16.gmra.mrb[0].mxu0 %v1851
        %v1890 = vpop.f32.mrb[0].mxu0
        %v1891 = vadd.f32 0.0, %v1890
        %v1892 = vpop.f32.mrb[0].mxu0
        %v1893 = vpop.f32.mrb[0].mxu0
        %v1894 = vpop.f32.mrb[0].mxu0
        %1895 = vdwg.mxu0
        %v1896 = vpack.c.bf16 %v1753, %v1753
        %v1897 = vpack.c.bf16 %v1799, %v1799
        %v1898 = vpack.c.bf16 %v1845, %v1845
        %v1899 = vpack.c.bf16 %v1891, %v1891
        %v1900 = vld [vmem:[%s2] sm:$0xf]
        %v1901 = vld [vmem:[%s2 + $0x4] sm:$0xf]
        %v1902 = vld [vmem:[%s2 + $0x8] sm:$0xf]
        %v1903 = vld [vmem:[%s2 + $0xc] sm:$0xf]
        %v1905 = vsel %vm1474, %v1896, 0
        %v1908 = vsel %vm1714, %v1900, 0
        %1910 = vmatprep.subr.bf16.mxu0 0
        %1911 = vmatpush1.bf16.msra.mxu0 %v1908
        %1912 = vmatprep.subr.bf16.mxu0 0
        %1913 = vmatpush1.bf16.msra.mxu0 0
        %1914 = vmatprep.subr.bf16.mxu0 0
        %1915 = vmatpush1.bf16.msra.mxu0 0
        %1916 = vmatprep.subr.bf16.mxu0 0
        %1917 = vmatpush1.bf16.msra.mxu0 0
        %1918 = vmatprep.subr.bf16.mxu0 0
        %1919 = vmatpush1.bf16.msra.mxu0 0
        %1920 = vmatprep.subr.bf16.mxu0 0
        %1921 = vmatpush1.bf16.msra.mxu0 0
        %1922 = vmatprep.subr.bf16.mxu0 0
        %1923 = vmatpush1.bf16.msra.mxu0 0
        %1924 = vmatprep.subr.bf16.mxu0 0
        %1925 = vmatpush1.bf16.msra.mxu0 0
        %1926 = vmatprep.subr.bf16.mxu0 0
        %1927 = vmatpush1.bf16.msra.mxu0 0
        %1928 = vmatprep.subr.bf16.mxu0 0
        %1929 = vmatpush1.bf16.msra.mxu0 0
        %1930 = vmatprep.subr.bf16.mxu0 0
        %1931 = vmatpush1.bf16.msra.mxu0 0
        %1932 = vmatprep.subr.bf16.mxu0 0
        %1933 = vmatpush1.bf16.msra.mxu0 0
        %1934 = vmatprep.subr.bf16.mxu0 0
        %1935 = vmatpush1.bf16.msra.mxu0 0
        %1936 = vmatprep.subr.bf16.mxu0 0
        %1937 = vmatpush1.bf16.msra.mxu0 0
        %1938 = vmatprep.subr.bf16.mxu0 0
        %1939 = vmatpush1.bf16.msra.mxu0 0
        %1940 = vmatprep.subr.bf16.mxu0 0
        %1941 = vmatpush1.bf16.msra.mxu0 0
        %1942 = vmatprep.mubr.bf16.mxu0 0
        %1943 = vmatmul.mubr.bf16.gmra.mrb[0].mxu0 %v1905
        %v1944 = vpop.f32.mrb[0].mxu0
        %v1945 = vadd.f32 0.0, %v1944
        %v1946 = vpop.f32.mrb[0].mxu0
        %v1947 = vpop.f32.mrb[0].mxu0
        %v1948 = vpop.f32.mrb[0].mxu0
        %1949 = vdwg.mxu0
        %v1951 = vsel %vm1474, %v1897, 0
        %v1954 = vsel %vm1714, %v1901, 0
        %1956 = vmatprep.subr.bf16.mxu0 0
        %1957 = vmatpush1.bf16.msra.mxu0 %v1954
        %1958 = vmatprep.subr.bf16.mxu0 0
        %1959 = vmatpush1.bf16.msra.mxu0 0
        %1960 = vmatprep.subr.bf16.mxu0 0
        %1961 = vmatpush1.bf16.msra.mxu0 0
        %1962 = vmatprep.subr.bf16.mxu0 0
        %1963 = vmatpush1.bf16.msra.mxu0 0
        %1964 = vmatprep.subr.bf16.mxu0 0
        %1965 = vmatpush1.bf16.msra.mxu0 0
        %1966 = vmatprep.subr.bf16.mxu0 0
        %1967 = vmatpush1.bf16.msra.mxu0 0
        %1968 = vmatprep.subr.bf16.mxu0 0
        %1969 = vmatpush1.bf16.msra.mxu0 0
        %1970 = vmatprep.subr.bf16.mxu0 0
        %1971 = vmatpush1.bf16.msra.mxu0 0
        %1972 = vmatprep.subr.bf16.mxu0 0
        %1973 = vmatpush1.bf16.msra.mxu0 0
        %1974 = vmatprep.subr.bf16.mxu0 0
        %1975 = vmatpush1.bf16.msra.mxu0 0
        %1976 = vmatprep.subr.bf16.mxu0 0
        %1977 = vmatpush1.bf16.msra.mxu0 0
        %1978 = vmatprep.subr.bf16.mxu0 0
        %1979 = vmatpush1.bf16.msra.mxu0 0
        %1980 = vmatprep.subr.bf16.mxu0 0
        %1981 = vmatpush1.bf16.msra.mxu0 0
        %1982 = vmatprep.subr.bf16.mxu0 0
        %1983 = vmatpush1.bf16.msra.mxu0 0
        %1984 = vmatprep.subr.bf16.mxu0 0
        %1985 = vmatpush1.bf16.msra.mxu0 0
        %1986 = vmatprep.subr.bf16.mxu0 0
        %1987 = vmatpush1.bf16.msra.mxu0 0
        %1988 = vmatprep.mubr.bf16.mxu0 0
        %1989 = vmatmul.mubr.bf16.gmra.mrb[0].mxu0 %v1951
        %v1990 = vpop.f32.mrb[0].mxu0
        %v1991 = vadd.f32 0.0, %v1990
        %v1992 = vpop.f32.mrb[0].mxu0
        %v1993 = vpop.f32.mrb[0].mxu0
        %v1994 = vpop.f32.mrb[0].mxu0
        %1995 = vdwg.mxu0
        %v1997 = vsel %vm1474, %v1898, 0
        %v2000 = vsel %vm1714, %v1902, 0
        %2002 = vmatprep.subr.bf16.mxu0 0
        %2003 = vmatpush1.bf16.msra.mxu0 %v2000
        %2004 = vmatprep.subr.bf16.mxu0 0
        %2005 = vmatpush1.bf16.msra.mxu0 0
        %2006 = vmatprep.subr.bf16.mxu0 0
        %2007 = vmatpush1.bf16.msra.mxu0 0
        %2008 = vmatprep.subr.bf16.mxu0 0
        %2009 = vmatpush1.bf16.msra.mxu0 0
        %2010 = vmatprep.subr.bf16.mxu0 0
        %2011 = vmatpush1.bf16.msra.mxu0 0
        %2012 = vmatprep.subr.bf16.mxu0 0
        %2013 = vmatpush1.bf16.msra.mxu0 0
        %2014 = vmatprep.subr.bf16.mxu0 0
        %2015 = vmatpush1.bf16.msra.mxu0 0
        %2016 = vmatprep.subr.bf16.mxu0 0
        %2017 = vmatpush1.bf16.msra.mxu0 0
        %2018 = vmatprep.subr.bf16.mxu0 0
        %2019 = vmatpush1.bf16.msra.mxu0 0
        %2020 = vmatprep.subr.bf16.mxu0 0
        %2021 = vmatpush1.bf16.msra.mxu0 0
        %2022 = vmatprep.subr.bf16.mxu0 0
        %2023 = vmatpush1.bf16.msra.mxu0 0
        %2024 = vmatprep.subr.bf16.mxu0 0
        %2025 = vmatpush1.bf16.msra.mxu0 0
        %2026 = vmatprep.subr.bf16.mxu0 0
        %2027 = vmatpush1.bf16.msra.mxu0 0
        %2028 = vmatprep.subr.bf16.mxu0 0
        %2029 = vmatpush1.bf16.msra.mxu0 0
        %2030 = vmatprep.subr.bf16.mxu0 0
        %2031 = vmatpush1.bf16.msra.mxu0 0
        %2032 = vmatprep.subr.bf16.mxu0 0
        %2033 = vmatpush1.bf16.msra.mxu0 0
        %2034 = vmatprep.mubr.bf16.mxu0 0
        %2035 = vmatmul.mubr.bf16.gmra.mrb[0].mxu0 %v1997
        %v2036 = vpop.f32.mrb[0].mxu0
        %v2037 = vadd.f32 0.0, %v2036
        %v2038 = vpop.f32.mrb[0].mxu0
        %v2039 = vpop.f32.mrb[0].mxu0
        %v2040 = vpop.f32.mrb[0].mxu0
        %2041 = vdwg.mxu0
        %v2043 = vsel %vm1474, %v1899, 0
        %v2046 = vsel %vm1714, %v1903, 0
        %2048 = vmatprep.subr.bf16.mxu0 0
        %2049 = vmatpush1.bf16.msra.mxu0 %v2046
        %2050 = vmatprep.subr.bf16.mxu0 0
        %2051 = vmatpush1.bf16.msra.mxu0 0
        %2052 = vmatprep.subr.bf16.mxu0 0
        %2053 = vmatpush1.bf16.msra.mxu0 0
        %2054 = vmatprep.subr.bf16.mxu0 0
        %2055 = vmatpush1.bf16.msra.mxu0 0
        %2056 = vmatprep.subr.bf16.mxu0 0
        %2057 = vmatpush1.bf16.msra.mxu0 0
        %2058 = vmatprep.subr.bf16.mxu0 0
        %2059 = vmatpush1.bf16.msra.mxu0 0
        %2060 = vmatprep.subr.bf16.mxu0 0
        %2061 = vmatpush1.bf16.msra.mxu0 0
        %2062 = vmatprep.subr.bf16.mxu0 0
        %2063 = vmatpush1.bf16.msra.mxu0 0
        %2064 = vmatprep.subr.bf16.mxu0 0
        %2065 = vmatpush1.bf16.msra.mxu0 0
        %2066 = vmatprep.subr.bf16.mxu0 0
        %2067 = vmatpush1.bf16.msra.mxu0 0
        %2068 = vmatprep.subr.bf16.mxu0 0
        %2069 = vmatpush1.bf16.msra.mxu0 0
        %2070 = vmatprep.subr.bf16.mxu0 0
        %2071 = vmatpush1.bf16.msra.mxu0 0
        %2072 = vmatprep.subr.bf16.mxu0 0
        %2073 = vmatpush1.bf16.msra.mxu0 0
        %2074 = vmatprep.subr.bf16.mxu0 0
        %2075 = vmatpush1.bf16.msra.mxu0 0
        %2076 = vmatprep.subr.bf16.mxu0 0
        %2077 = vmatpush1.bf16.msra.mxu0 0
        %2078 = vmatprep.subr.bf16.mxu0 0
        %2079 = vmatpush1.bf16.msra.mxu0 0
        %2080 = vmatprep.mubr.bf16.mxu0 0
        %2081 = vmatmul.mubr.bf16.gmra.mrb[0].mxu0 %v2043
        %v2082 = vpop.f32.mrb[0].mxu0
        %v2083 = vadd.f32 0.0, %v2082
        %v2084 = vpop.f32.mrb[0].mxu0
        %v2085 = vpop.f32.mrb[0].mxu0
        %v2086 = vpop.f32.mrb[0].mxu0
        %2087 = vdwg.mxu0
        %v2088 = vsel %vm337, %v1945, 0.0
        %v2089 = vsel %vm337, %v1991, 0.0
        %v2090 = vadd.f32 %v2088, %v2089
        %v2091 = vsel %vm337, %v2037, 0.0
        %v2092 = vadd.f32 %v2090, %v2091
        %v2093 = vsel %vm337, %v2083, 0.0
        %v2094 = vadd.f32 %v2092, %v2093
        %2095 = vst.msk [vmem:[%s269] sm:$0xff] %vm337, %v2094
        %s2096 = sand.u32 %s181, 1
        %s2097 = scalar_lea.sflag [#allocation3], %s2096
        %s2098 = sand.u32 %s181, 1
        %s2099 = smul.addr %s2098, 8
        %s2100 = scalar_lea.vmem [#allocation2], %s2099
        // Predicated region
        $region49: #{tpu_custom_call.1} parent=47 // pred_check
          %p2101 = pneg %p191
        $region50: #{tpu_custom_call.1} parent=47 // pred_check_branch
          %2103 = sbr.rel (%p2101) target = $region52
        $region51: #{tpu_custom_call.1} parent=47 // pred_region
          %s2105 = ssub.s32 128, 128
          %2106 = vsyncadd %s2097, %s2105
          %s2107 = smul.addr %s21, 128
          %s2108 = scalar_lea.hbm %s7, %s2107
          %s2110 = sshll.u32 %s2100, 4
          %s2111 = int_to_ptr.vmem [resolvable:$true] %s2110
          %2113 = dma.vmem_to_hbm [thread:$0]  %s2111, 128, %s2108, %s2097
        $region52: #{tpu_custom_call.1} parent=47 // pred_fallthru
          _
      $region48: #{tpu_custom_call.1} parent=5 // pred_fallthru
        _
      %p2114 = scmp.le.s32.totalorder 2, %s16
      // Predicated region
      $region53: #{tpu_custom_call.1} parent=5 // pred_check
        %p2115 = pneg %p2114
      $region54: #{tpu_custom_call.1} parent=5 // pred_check_branch
        %2117 = sbr.rel (%p2115) target = $region56
      $region55: #{tpu_custom_call.1} parent=5 // pred_region
        %s2118 = ssub.s32 %s16, 2
        // Predicated region
        $region57: #{tpu_custom_call.1} parent=55 // pred_check
          %p2119 = pneg %p197
        $region58: #{tpu_custom_call.1} parent=55 // pred_check_branch
          %2121 = sbr.rel (%p2119) target = $region60
        $region59: #{tpu_custom_call.1} parent=55 // pred_region
          %s2122 = sand.u32 %s182, 1
          %s2123 = scalar_lea.sflag [#allocation3], %s2122
          %s2124 = sand.u32 %s182, 1
          %s2125 = smul.addr %s2124, 8
          %s2126 = scalar_lea.vmem [#allocation2], %s2125
          %2127 = dma.done %s2123, 128
        $region60: #{tpu_custom_call.1} parent=55 // pred_fallthru
          _
      $region56: #{tpu_custom_call.1} parent=5 // pred_fallthru
        _
    $region6: #{tpu_custom_call.1} parent=1 // loop_footer
      %s20 = sadd.s32 1, %s16
    $region7: #{tpu_custom_call.1} parent=1 // loop_footer_branch
      %15 = sbr.rel target = $region3
    $region8: #{tpu_custom_call.1} parent=1 // loop_exit
      _
    %2128 = vsyncpa [#allocation3], 1
    %s2129 = scalar_lea.sflag [#allocation3], 1
    %2130 = vsyncpa %s2129, 1

</llo_original>
